<compile_context>
chip_gen: v7x
topology: tpu7x:2x2x1
jax: 0.10.0
libtpu: 0.0.40
codegen_flags: <defaults>
</compile_context>

<pallas_src>
import functools

import jax
import jax.numpy as jnp
from jax import lax
from jax.experimental import pallas as pl
from jax.experimental.pallas import tpu as pltpu


BROW = 8  # batch rows per block: full sublane group -> unmasked stores


# ----------------------------- kernels ------------------------------------ #

def _fused_seq_kernel(kd, nk,
                      x_ref, h0_ref, c0_ref,
                      w1_ref, b1_ref, w2_ref, b2_ref,
                      wih_ref, whh_ref, bl_ref,
                      wh_ref, bh_ref,
                      heads_ref, hout_ref, cout_ref,
                      gx_scr):
    """Fused MLP + LSTM(unrolled) + heads for a time-major block x of shape (T, BROW, D)."""
    T, B, D = x_ref.shape
    H = whh_ref.shape[0]
    G = 4 * H

    # ---- MLP over all T*B rows (one big-M matmul instead of per-step M=B) ----
    x2d = x_ref[...].reshape(T * B, D).astype(jnp.bfloat16)
    h1 = jnp.dot(x2d, w1_ref[...], preferred_element_type=jnp.float32) + b1_ref[...]
    h1 = jnp.maximum(h1, 0.0)
    # dropout(p=0.3) -> identity in eval mode.  # TODO(synk): no train-mode dropout.
    h2 = jnp.dot(h1.astype(jnp.bfloat16), w2_ref[...],
                 preferred_element_type=jnp.float32) + b2_ref[...]
    h2 = jnp.maximum(h2, 0.0)

    # ---- Hoisted input projection for every timestep: gx = feat @ W_ih + b ----
    gx = jnp.dot(h2.astype(jnp.bfloat16), wih_ref[...],
                 preferred_element_type=jnp.float32) + bl_ref[...]
    # Stage time-major in VMEM scratch: per-step access is a leading-dim select
    # (no cross-sublane slicing on the serial path) and vreg pressure stays bounded.
    gx_scr[...] = gx.reshape(T, B, G)

    # ---- LSTM recurrence: only h @ W_hh remains on the serial path, fully unrolled ----
    # TODO(synk): keep W_hh staged in the MXU across steps (matmul_push_rhs/acc_lhs/pop).
    h = h0_ref[...]
    c = c0_ref[...]
    whh = whh_ref[...]
    for t in range(T):  # T is small & static
        gates = gx_scr[t] + jnp.dot(h.astype(jnp.bfloat16), whh,
                                    preferred_element_type=jnp.float32)
        i_g = jax.nn.sigmoid(gates[:, 0 * H:1 * H])
        f_g = jax.nn.sigmoid(gates[:, 1 * H:2 * H])
        g_g = jnp.tanh(gates[:, 2 * H:3 * H])
        o_g = jax.nn.sigmoid(gates[:, 3 * H:4 * H])
        c = f_g * c + i_g * g_g
        h = o_g * jnp.tanh(c)

    # ---- Heads: one lane-dense matmul (keypoints ++ confidence, padded to 128 lanes) ----
    heads = jnp.dot(h.astype(jnp.bfloat16), wh_ref[...],
                    preferred_element_type=jnp.float32) + bh_ref[...]
    col = lax.broadcasted_iota(jnp.int32, heads.shape, 1)
    conf_mask = (col >= kd) & (col < kd + nk)
    heads = jnp.where(conf_mask, jax.nn.sigmoid(heads), heads)

    heads_ref[...] = heads.astype(heads_ref.dtype)
    hout_ref[...] = h.astype(hout_ref.dtype)
    cout_ref[...] = c.astype(cout_ref.dtype)


def _fused_vec_kernel(kd, nk,
                      x_ref, w1_ref, b1_ref, w2_ref, b2_ref,
                      wh_ref, bh_ref, heads_ref):
    """Fused MLP + heads for a non-sequence block x of shape (BROW, D)."""
    x = x_ref[...].astype(jnp.bfloat16)
    h1 = jnp.dot(x, w1_ref[...], preferred_element_type=jnp.float32) + b1_ref[...]
    h1 = jnp.maximum(h1, 0.0)
    # dropout -> identity (eval mode)
    h2 = jnp.dot(h1.astype(jnp.bfloat16), w2_ref[...],
                 preferred_element_type=jnp.float32) + b2_ref[...]
    h2 = jnp.maximum(h2, 0.0)
    heads = jnp.dot(h2.astype(jnp.bfloat16), wh_ref[...],
                    preferred_element_type=jnp.float32) + bh_ref[...]
    col = lax.broadcasted_iota(jnp.int32, heads.shape, 1)
    conf_mask = (col >= kd) & (col < kd + nk)
    heads_ref[...] = jnp.where(conf_mask, jax.nn.sigmoid(heads), heads).astype(heads_ref.dtype)


# ----------------------------- wrappers ------------------------------------ #

# Weights: full-array VMEM residents (placed once; not re-pipelined per grid step).
_W_SPEC = pl.BlockSpec(memory_space=pltpu.VMEM)


def _pad_rows(a, axis, mult):
    n = a.shape[axis]
    pad = (-n) % mult
    if pad == 0:
        return a
    widths = [(0, 0)] * a.ndim
    widths[axis] = (0, pad)
    return jnp.pad(a, widths)


def run_fused_seq(x_tm, h0, c0, p, kd, nk):
    """x_tm: (T, B_pad, D) time-major; h0/c0: (B_pad, H); B_pad % BROW == 0."""
    T, Bp, D = x_tm.shape
    H = p["whh"].shape[0]
    P = p["wheads"].shape[1]
    kern = functools.partial(_fused_seq_kernel, kd, nk)
    nblk = Bp // BROW
    return pl.pallas_call(
        kern,
        grid=(nblk,),
        out_shape=(
            jax.ShapeDtypeStruct((Bp, P), jnp.float32),
            jax.ShapeDtypeStruct((Bp, H), jnp.float32),
            jax.ShapeDtypeStruct((Bp, H), jnp.float32),
        ),
        in_specs=[
            pl.BlockSpec((T, BROW, D), lambda i: (0, i, 0)),   # x, time-major row block
            pl.BlockSpec((BROW, H), lambda i: (i, 0)),          # h0
            pl.BlockSpec((BROW, H), lambda i: (i, 0)),          # c0
        ] + [_W_SPEC] * 9,
        out_specs=(
            pl.BlockSpec((BROW, P), lambda i: (i, 0)),
            pl.BlockSpec((BROW, H), lambda i: (i, 0)),
            pl.BlockSpec((BROW, H), lambda i: (i, 0)),
        ),
        scratch_shapes=[pltpu.VMEM((T, BROW, 4 * H), jnp.float32)],
        compiler_params=pltpu.CompilerParams(dimension_semantics=("parallel",)),
    )(x_tm, h0, c0,
      p["w1"], p["b1"], p["w2"], p["b2"],
      p["wih"], p["whh"], p["blstm"],
      p["wheads"], p["bheads"])


def run_fused_vec(x, p, kd, nk):
    """x: (B_pad, D), B_pad % BROW == 0."""
    Bp, D = x.shape
    P = p["wheads"].shape[1]
    kern = functools.partial(_fused_vec_kernel, kd, nk)
    nblk = Bp // BROW
    return pl.pallas_call(
        kern,
        grid=(nblk,),
        out_shape=jax.ShapeDtypeStruct((Bp, P), jnp.float32),
        in_specs=[pl.BlockSpec((BROW, D), lambda i: (i, 0))] + [_W_SPEC] * 6,
        out_specs=pl.BlockSpec((BROW, P), lambda i: (i, 0)),
        compiler_params=pltpu.CompilerParams(dimension_semantics=("parallel",)),
    )(x, p["w1"], p["b1"], p["w2"], p["b2"], p["wheads"], p["bheads"])


# --------------------------- parameter setup ------------------------------- #

def init_params(key, input_dim, hidden_dim, num_keypoints, output_dim):
    ks = jax.random.split(key, 8)

    def kaiming(k, fan_in, fan_out):
        # kaiming_normal_(fan_in, relu): std = sqrt(2 / fan_in)
        std = (2.0 / fan_in) ** 0.5
        return jax.random.normal(k, (fan_in, fan_out), jnp.float32) * std

    kd = num_keypoints * output_dim
    head_cols = kd + num_keypoints
    padded_cols = ((head_cols + 127) // 128) * 128  # lane-dense head output

    wk = kaiming(ks[2], hidden_dim, kd)
    wc = kaiming(ks[3], hidden_dim, num_keypoints)
    wheads = jnp.zeros((hidden_dim, padded_cols), jnp.float32)
    wheads = wheads.at[:, :kd].set(wk).at[:, kd:head_cols].set(wc)

    # LSTM: PyTorch default init U(-1/sqrt(H), 1/sqrt(H)); gate order i, f, g, o.
    # NOTE: if loading real PyTorch weights, transpose W_ih/W_hh ((4H,in)->(in,4H)),
    # transpose Linear weights ((out,in)->(in,out)) and combine b_ih + b_hh.
    bound = 1.0 / (hidden_dim ** 0.5)
    wih = jax.random.uniform(ks[4], (hidden_dim, 4 * hidden_dim), jnp.float32, -bound, bound)
    whh = jax.random.uniform(ks[5], (hidden_dim, 4 * hidden_dim), jnp.float32, -bound, bound)
    b_ih = jax.random.uniform(ks[6], (4 * hidden_dim,), jnp.float32, -bound, bound)
    b_hh = jax.random.uniform(ks[7], (4 * hidden_dim,), jnp.float32, -bound, bound)

    # Weights in bf16 (MXU operands); biases/accumulation stay f32.
    params = {
        "w1": kaiming(ks[0], input_dim, hidden_dim).astype(jnp.bfloat16),
        "b1": jnp.zeros((1, hidden_dim), jnp.float32),
        "w2": kaiming(ks[1], hidden_dim, hidden_dim).astype(jnp.bfloat16),
        "b2": jnp.zeros((1, hidden_dim), jnp.float32),
        "wih": wih.astype(jnp.bfloat16),
        "whh": whh.astype(jnp.bfloat16),
        "blstm": (b_ih + b_hh).reshape(1, 4 * hidden_dim),
        "wheads": wheads.astype(jnp.bfloat16),
        "bheads": jnp.zeros((1, padded_cols), jnp.float32),
    }
    return params


# ----------------------------- forward pass -------------------------------- #

@functools.partial(jax.jit, static_argnames=("num_keypoints", "output_dim"))
def pose_estimator_forward(x, params, num_keypoints, output_dim, hidden=None):
    """x: (B, D) or (B, T, D) float32. Returns (keypoints, confidence, hidden)."""
    batch = x.shape[0]
    hidden_dim = params["whh"].shape[0]
    kd = num_keypoints * output_dim

    if x.ndim > 2:
        # Time-major layout (free wrapper transpose) + pad batch rows to BROW.
        x_tm = _pad_rows(jnp.transpose(x, (1, 0, 2)), axis=1, mult=BROW)
        bp = x_tm.shape[1]
        if hidden is None:
            h0 = jnp.zeros((bp, hidden_dim), jnp.float32)
            c0 = jnp.zeros((bp, hidden_dim), jnp.float32)
        else:
            h0 = _pad_rows(hidden[0][0].astype(jnp.float32), 0, BROW)
            c0 = _pad_rows(hidden[1][0].astype(jnp.float32), 0, BROW)
        heads_out, h_n, c_n = run_fused_seq(x_tm, h0, c0, params, kd, num_keypoints)
        heads_out = heads_out[:batch]
        hidden = (h_n[None, :batch, :], c_n[None, :batch, :])  # (num_layers=1, B, H)
    else:
        xp = _pad_rows(x, 0, BROW)
        heads_out = run_fused_vec(xp, params, kd, num_keypoints)[:batch]
        # hidden passes through unchanged (matches PyTorch 2-D path)

    keypoints = heads_out[:, :kd].reshape(batch, num_keypoints, output_dim)
    confidence = heads_out[:, kd:kd + num_keypoints]
    return keypoints, confidence, hidden


# --------------------------------- main ------------------------------------ #

if __name__ == "__main__":
    batch, seq = 2, 8
    input_dim, hidden_dim = 128, 128
    num_keypoints, output_dim = 17, 3

    key = jax.random.PRNGKey(0)
    pkey, xkey, x2key = jax.random.split(key, 3)
    params = init_params(pkey, input_dim, hidden_dim, num_keypoints, output_dim)

    # Sequence path (MLP + LSTM + heads, fully fused, batch-gridded).
    x = jax.random.normal(xkey, (batch, seq, input_dim), jnp.float32)
    keypoints, confidence, hidden = pose_estimator_forward(
        x, params, num_keypoints=num_keypoints, output_dim=output_dim)
    jax.block_until_ready((keypoints, confidence, hidden))

    assert keypoints.shape == (batch, num_keypoints, output_dim)
    assert confidence.shape == (batch, num_keypoints)
    assert hidden[0].shape == (1, batch, hidden_dim)
    assert hidden[1].shape == (1, batch, hidden_dim)
    assert bool(jnp.all(jnp.isfinite(keypoints)))
    assert bool(jnp.all((confidence >= 0.0) & (confidence <= 1.0)))

    # Streaming continuation: feed the returned hidden state back in.
    kp_s, conf_s, hidden_s = pose_estimator_forward(
        x, params, num_keypoints=num_keypoints, output_dim=output_dim, hidden=hidden)
    jax.block_until_ready((kp_s, conf_s, hidden_s))
    assert kp_s.shape == (batch, num_keypoints, output_dim)

    # Non-sequence (2-D) path (MLP + heads fused).
    x2 = jax.random.normal(x2key, (batch, input_dim), jnp.float32)
    kp2, conf2, hid2 = pose_estimator_forward(
        x2, params, num_keypoints=num_keypoints, output_dim=output_dim)
    jax.block_until_ready((kp2, conf2))

    assert kp2.shape == (batch, num_keypoints, output_dim)
    assert conf2.shape == (batch, num_keypoints)
    assert hid2 is None
    assert bool(jnp.all((conf2 >= 0.0) & (conf2 <= 1.0)))

    print("KERNEL_OK")
</pallas_src>

<mosaic_0001>
module attributes {stable_mosaic.version = 11 : i64} {
  func.func @_fused_seq_kernel(%arg0: i32, %arg1: memref<8x8x128xf32, #tpu.memory_space<vmem>>, %arg2: memref<8x128xf32, #tpu.memory_space<vmem>>, %arg3: memref<8x128xf32, #tpu.memory_space<vmem>>, %arg4: memref<128x128xbf16, #tpu.memory_space<vmem>>, %arg5: memref<1x128xf32, #tpu.memory_space<vmem>>, %arg6: memref<128x128xbf16, #tpu.memory_space<vmem>>, %arg7: memref<1x128xf32, #tpu.memory_space<vmem>>, %arg8: memref<128x512xbf16, #tpu.memory_space<vmem>>, %arg9: memref<128x512xbf16, #tpu.memory_space<vmem>>, %arg10: memref<1x512xf32, #tpu.memory_space<vmem>>, %arg11: memref<128x128xbf16, #tpu.memory_space<vmem>>, %arg12: memref<1x128xf32, #tpu.memory_space<vmem>>, %arg13: memref<8x128xf32, #tpu.memory_space<vmem>>, %arg14: memref<8x128xf32, #tpu.memory_space<vmem>>, %arg15: memref<8x128xf32, #tpu.memory_space<vmem>>, %arg16: memref<8x8x512xf32, #tpu.memory_space<vmem>>) attributes {dimension_semantics = [#tpu.dimension_semantics<parallel>], iteration_bounds = array<i64: 1>, scalar_prefetch = 0 : i64, scratch_operands = 1 : i64, tpu.core_type = #tpu.core_type<tc>, window_params = [{transform_indices = @transform_0, window_bounds = array<i64: 8, 8, 128>}, {transform_indices = @transform_1, window_bounds = array<i64: 8, 128>}, {transform_indices = @transform_2, window_bounds = array<i64: 8, 128>}, {pipeline_mode = #tpu.pipeline_mode<synchronous>, transform_indices = @transform_3, window_bounds = array<i64: 128, 128>}, {pipeline_mode = #tpu.pipeline_mode<synchronous>, transform_indices = @transform_4, window_bounds = array<i64: 1, 128>}, {pipeline_mode = #tpu.pipeline_mode<synchronous>, transform_indices = @transform_5, window_bounds = array<i64: 128, 128>}, {pipeline_mode = #tpu.pipeline_mode<synchronous>, transform_indices = @transform_6, window_bounds = array<i64: 1, 128>}, {pipeline_mode = #tpu.pipeline_mode<synchronous>, transform_indices = @transform_7, window_bounds = array<i64: 128, 512>}, {pipeline_mode = #tpu.pipeline_mode<synchronous>, transform_indices = @transform_8, window_bounds = array<i64: 128, 512>}, {pipeline_mode = #tpu.pipeline_mode<synchronous>, transform_indices = @transform_9, window_bounds = array<i64: 1, 512>}, {pipeline_mode = #tpu.pipeline_mode<synchronous>, transform_indices = @transform_10, window_bounds = array<i64: 128, 128>}, {pipeline_mode = #tpu.pipeline_mode<synchronous>, transform_indices = @transform_11, window_bounds = array<i64: 1, 128>}, {transform_indices = @transform_12, window_bounds = array<i64: 8, 128>}, {transform_indices = @transform_13, window_bounds = array<i64: 8, 128>}, {transform_indices = @transform_14, window_bounds = array<i64: 8, 128>}]} {
    %c0 = arith.constant 0 : index
    %c0_0 = arith.constant 0 : index
    %c0_1 = arith.constant 0 : index
    %0 = vector.load %arg1[%c0, %c0_0, %c0_1] : memref<8x8x128xf32, #tpu.memory_space<vmem>>, vector<8x8x128xf32>
    %1 = vector.shape_cast %0 : vector<8x8x128xf32> to vector<64x128xf32>
    %2 = arith.truncf %1 : vector<64x128xf32> to vector<64x128xbf16>
    %c0_2 = arith.constant 0 : index
    %c0_3 = arith.constant 0 : index
    %3 = vector.load %arg4[%c0_2, %c0_3] : memref<128x128xbf16, #tpu.memory_space<vmem>>, vector<128x128xbf16>
    %cst = arith.constant dense<0.000000e+00> : vector<64x128xf32>
    %4 = tpu.matmul %2, %3, %cst {dimension_numbers = #tpu.dot_dimension_numbers<[1], [0], [0], [1], [0, 0, 1, 1], [], []>} : vector<64x128xbf16>, vector<128x128xbf16>, vector<64x128xf32> -> vector<64x128xf32>
    %c0_4 = arith.constant 0 : index
    %c0_5 = arith.constant 0 : index
    %5 = vector.load %arg5[%c0_4, %c0_5] : memref<1x128xf32, #tpu.memory_space<vmem>>, vector<1x128xf32>
    %6 = vector.broadcast %5 : vector<1x128xf32> to vector<64x128xf32>
    %7 = arith.addf %4, %6 : vector<64x128xf32>
    %cst_6 = arith.constant 0.000000e+00 : f32
    %8 = vector.broadcast %cst_6 : f32 to vector<64x128xf32>
    %9 = arith.maximumf %7, %8 : vector<64x128xf32>
    %10 = arith.truncf %9 : vector<64x128xf32> to vector<64x128xbf16>
    %c0_7 = arith.constant 0 : index
    %c0_8 = arith.constant 0 : index
    %11 = vector.load %arg6[%c0_7, %c0_8] : memref<128x128xbf16, #tpu.memory_space<vmem>>, vector<128x128xbf16>
    %cst_9 = arith.constant dense<0.000000e+00> : vector<64x128xf32>
    %12 = tpu.matmul %10, %11, %cst_9 {dimension_numbers = #tpu.dot_dimension_numbers<[1], [0], [0], [1], [0, 0, 1, 1], [], []>} : vector<64x128xbf16>, vector<128x128xbf16>, vector<64x128xf32> -> vector<64x128xf32>
    %c0_10 = arith.constant 0 : index
    %c0_11 = arith.constant 0 : index
    %13 = vector.load %arg7[%c0_10, %c0_11] : memref<1x128xf32, #tpu.memory_space<vmem>>, vector<1x128xf32>
    %14 = vector.broadcast %13 : vector<1x128xf32> to vector<64x128xf32>
    %15 = arith.addf %12, %14 : vector<64x128xf32>
    %cst_12 = arith.constant 0.000000e+00 : f32
    %16 = vector.broadcast %cst_12 : f32 to vector<64x128xf32>
    %17 = arith.maximumf %15, %16 : vector<64x128xf32>
    %18 = arith.truncf %17 : vector<64x128xf32> to vector<64x128xbf16>
    %c0_13 = arith.constant 0 : index
    %c0_14 = arith.constant 0 : index
    %19 = vector.load %arg8[%c0_13, %c0_14] : memref<128x512xbf16, #tpu.memory_space<vmem>>, vector<128x512xbf16>
    %cst_15 = arith.constant dense<0.000000e+00> : vector<64x512xf32>
    %20 = tpu.matmul %18, %19, %cst_15 {dimension_numbers = #tpu.dot_dimension_numbers<[1], [0], [0], [1], [0, 0, 1, 1], [], []>} : vector<64x128xbf16>, vector<128x512xbf16>, vector<64x512xf32> -> vector<64x512xf32>
    %c0_16 = arith.constant 0 : index
    %c0_17 = arith.constant 0 : index
    %21 = vector.load %arg10[%c0_16, %c0_17] : memref<1x512xf32, #tpu.memory_space<vmem>>, vector<1x512xf32>
    %22 = vector.broadcast %21 : vector<1x512xf32> to vector<64x512xf32>
    %23 = arith.addf %20, %22 : vector<64x512xf32>
    %24 = vector.shape_cast %23 : vector<64x512xf32> to vector<8x8x512xf32>
    %c0_18 = arith.constant 0 : index
    %c0_19 = arith.constant 0 : index
    %c0_20 = arith.constant 0 : index
    %25 = vector.load %arg16[%c0_18, %c0_19, %c0_20] : memref<8x8x512xf32, #tpu.memory_space<vmem>>, vector<8x8x512xf32>
    tpu.vector_store %arg16[%c0_18, %c0_19, %c0_20], %24 {strides = array<i32>} : memref<8x8x512xf32, #tpu.memory_space<vmem>>, vector<8x8x512xf32>,
    %c0_21 = arith.constant 0 : index
    %c0_22 = arith.constant 0 : index
    %26 = vector.load %arg2[%c0_21, %c0_22] : memref<8x128xf32, #tpu.memory_space<vmem>>, vector<8x128xf32>
    %c0_23 = arith.constant 0 : index
    %c0_24 = arith.constant 0 : index
    %27 = vector.load %arg3[%c0_23, %c0_24] : memref<8x128xf32, #tpu.memory_space<vmem>>, vector<8x128xf32>
    %c0_25 = arith.constant 0 : index
    %c0_26 = arith.constant 0 : index
    %28 = vector.load %arg9[%c0_25, %c0_26] : memref<128x512xbf16, #tpu.memory_space<vmem>>, vector<128x512xbf16>
    %c0_27 = arith.constant 0 : index
    %c0_28 = arith.constant 0 : index
    %c0_29 = arith.constant 0 : index
    %29 = vector.load %arg16[%c0_27, %c0_28, %c0_29] : memref<8x8x512xf32, #tpu.memory_space<vmem>>, vector<1x8x512xf32>
    %30 = vector.shape_cast %29 : vector<1x8x512xf32> to vector<8x512xf32>
    %31 = arith.truncf %26 : vector<8x128xf32> to vector<8x128xbf16>
    %cst_30 = arith.constant dense<0.000000e+00> : vector<8x512xf32>
    %32 = tpu.matmul %31, %28, %cst_30 {dimension_numbers = #tpu.dot_dimension_numbers<[1], [0], [0], [1], [0, 0, 1, 1], [], []>} : vector<8x128xbf16>, vector<128x512xbf16>, vector<8x512xf32> -> vector<8x512xf32>
    %33 = arith.addf %30, %32 : vector<8x512xf32>
    %34 = vector.extract_strided_slice %33 {offsets = [0, 0], sizes = [8, 128], strides = [1, 1]} : vector<8x512xf32> to vector<8x128xf32>
    %35 = arith.negf %34 : vector<8x128xf32>
    %36 = math.exp %35 : vector<8x128xf32>
    %cst_31 = arith.constant 1.000000e+00 : f32
    %37 = vector.broadcast %cst_31 : f32 to vector<8x128xf32>
    %38 = arith.addf %37, %36 : vector<8x128xf32>
    %39 = arith.divf %37, %38 : vector<8x128xf32>
    %40 = vector.extract_strided_slice %33 {offsets = [0, 128], sizes = [8, 128], strides = [1, 1]} : vector<8x512xf32> to vector<8x128xf32>
    %41 = arith.negf %40 : vector<8x128xf32>
    %42 = math.exp %41 : vector<8x128xf32>
    %cst_32 = arith.constant 1.000000e+00 : f32
    %43 = vector.broadcast %cst_32 : f32 to vector<8x128xf32>
    %44 = arith.addf %43, %42 : vector<8x128xf32>
    %45 = arith.divf %43, %44 : vector<8x128xf32>
    %46 = vector.extract_strided_slice %33 {offsets = [0, 256], sizes = [8, 128], strides = [1, 1]} : vector<8x512xf32> to vector<8x128xf32>
    %47 = math.tanh %46 : vector<8x128xf32>
    %48 = vector.extract_strided_slice %33 {offsets = [0, 384], sizes = [8, 128], strides = [1, 1]} : vector<8x512xf32> to vector<8x128xf32>
    %49 = arith.negf %48 : vector<8x128xf32>
    %50 = math.exp %49 : vector<8x128xf32>
    %cst_33 = arith.constant 1.000000e+00 : f32
    %51 = vector.broadcast %cst_33 : f32 to vector<8x128xf32>
    %52 = arith.addf %51, %50 : vector<8x128xf32>
    %53 = arith.divf %51, %52 : vector<8x128xf32>
    %54 = arith.mulf %45, %27 : vector<8x128xf32>
    %55 = arith.mulf %39, %47 : vector<8x128xf32>
    %56 = arith.addf %54, %55 : vector<8x128xf32>
    %57 = math.tanh %56 : vector<8x128xf32>
    %58 = arith.mulf %53, %57 : vector<8x128xf32>
    %c1 = arith.constant 1 : index
    %c0_34 = arith.constant 0 : index
    %c0_35 = arith.constant 0 : index
    %59 = vector.load %arg16[%c1, %c0_34, %c0_35] : memref<8x8x512xf32, #tpu.memory_space<vmem>>, vector<1x8x512xf32>
    %60 = vector.shape_cast %59 : vector<1x8x512xf32> to vector<8x512xf32>
    %61 = arith.truncf %58 : vector<8x128xf32> to vector<8x128xbf16>
    %cst_36 = arith.constant dense<0.000000e+00> : vector<8x512xf32>
    %62 = tpu.matmul %61, %28, %cst_36 {dimension_numbers = #tpu.dot_dimension_numbers<[1], [0], [0], [1], [0, 0, 1, 1], [], []>} : vector<8x128xbf16>, vector<128x512xbf16>, vector<8x512xf32> -> vector<8x512xf32>
    %63 = arith.addf %60, %62 : vector<8x512xf32>
    %64 = vector.extract_strided_slice %63 {offsets = [0, 0], sizes = [8, 128], strides = [1, 1]} : vector<8x512xf32> to vector<8x128xf32>
    %65 = arith.negf %64 : vector<8x128xf32>
    %66 = math.exp %65 : vector<8x128xf32>
    %cst_37 = arith.constant 1.000000e+00 : f32
    %67 = vector.broadcast %cst_37 : f32 to vector<8x128xf32>
    %68 = arith.addf %67, %66 : vector<8x128xf32>
    %69 = arith.divf %67, %68 : vector<8x128xf32>
    %70 = vector.extract_strided_slice %63 {offsets = [0, 128], sizes = [8, 128], strides = [1, 1]} : vector<8x512xf32> to vector<8x128xf32>
    %71 = arith.negf %70 : vector<8x128xf32>
    %72 = math.exp %71 : vector<8x128xf32>
    %cst_38 = arith.constant 1.000000e+00 : f32
    %73 = vector.broadcast %cst_38 : f32 to vector<8x128xf32>
    %74 = arith.addf %73, %72 : vector<8x128xf32>
    %75 = arith.divf %73, %74 : vector<8x128xf32>
    %76 = vector.extract_strided_slice %63 {offsets = [0, 256], sizes = [8, 128], strides = [1, 1]} : vector<8x512xf32> to vector<8x128xf32>
    %77 = math.tanh %76 : vector<8x128xf32>
    %78 = vector.extract_strided_slice %63 {offsets = [0, 384], sizes = [8, 128], strides = [1, 1]} : vector<8x512xf32> to vector<8x128xf32>
    %79 = arith.negf %78 : vector<8x128xf32>
    %80 = math.exp %79 : vector<8x128xf32>
    %cst_39 = arith.constant 1.000000e+00 : f32
    %81 = vector.broadcast %cst_39 : f32 to vector<8x128xf32>
    %82 = arith.addf %81, %80 : vector<8x128xf32>
    %83 = arith.divf %81, %82 : vector<8x128xf32>
    %84 = arith.mulf %75, %56 : vector<8x128xf32>
    %85 = arith.mulf %69, %77 : vector<8x128xf32>
    %86 = arith.addf %84, %85 : vector<8x128xf32>
    %87 = math.tanh %86 : vector<8x128xf32>
    %88 = arith.mulf %83, %87 : vector<8x128xf32>
    %c2 = arith.constant 2 : index
    %c0_40 = arith.constant 0 : index
    %c0_41 = arith.constant 0 : index
    %89 = vector.load %arg16[%c2, %c0_40, %c0_41] : memref<8x8x512xf32, #tpu.memory_space<vmem>>, vector<1x8x512xf32>
    %90 = vector.shape_cast %89 : vector<1x8x512xf32> to vector<8x512xf32>
    %91 = arith.truncf %88 : vector<8x128xf32> to vector<8x128xbf16>
    %cst_42 = arith.constant dense<0.000000e+00> : vector<8x512xf32>
    %92 = tpu.matmul %91, %28, %cst_42 {dimension_numbers = #tpu.dot_dimension_numbers<[1], [0], [0], [1], [0, 0, 1, 1], [], []>} : vector<8x128xbf16>, vector<128x512xbf16>, vector<8x512xf32> -> vector<8x512xf32>
    %93 = arith.addf %90, %92 : vector<8x512xf32>
    %94 = vector.extract_strided_slice %93 {offsets = [0, 0], sizes = [8, 128], strides = [1, 1]} : vector<8x512xf32> to vector<8x128xf32>
    %95 = arith.negf %94 : vector<8x128xf32>
    %96 = math.exp %95 : vector<8x128xf32>
    %cst_43 = arith.constant 1.000000e+00 : f32
    %97 = vector.broadcast %cst_43 : f32 to vector<8x128xf32>
    %98 = arith.addf %97, %96 : vector<8x128xf32>
    %99 = arith.divf %97, %98 : vector<8x128xf32>
    %100 = vector.extract_strided_slice %93 {offsets = [0, 128], sizes = [8, 128], strides = [1, 1]} : vector<8x512xf32> to vector<8x128xf32>
    %101 = arith.negf %100 : vector<8x128xf32>
    %102 = math.exp %101 : vector<8x128xf32>
    %cst_44 = arith.constant 1.000000e+00 : f32
    %103 = vector.broadcast %cst_44 : f32 to vector<8x128xf32>
    %104 = arith.addf %103, %102 : vector<8x128xf32>
    %105 = arith.divf %103, %104 : vector<8x128xf32>
    %106 = vector.extract_strided_slice %93 {offsets = [0, 256], sizes = [8, 128], strides = [1, 1]} : vector<8x512xf32> to vector<8x128xf32>
    %107 = math.tanh %106 : vector<8x128xf32>
    %108 = vector.extract_strided_slice %93 {offsets = [0, 384], sizes = [8, 128], strides = [1, 1]} : vector<8x512xf32> to vector<8x128xf32>
    %109 = arith.negf %108 : vector<8x128xf32>
    %110 = math.exp %109 : vector<8x128xf32>
    %cst_45 = arith.constant 1.000000e+00 : f32
    %111 = vector.broadcast %cst_45 : f32 to vector<8x128xf32>
    %112 = arith.addf %111, %110 : vector<8x128xf32>
    %113 = arith.divf %111, %112 : vector<8x128xf32>
    %114 = arith.mulf %105, %86 : vector<8x128xf32>
    %115 = arith.mulf %99, %107 : vector<8x128xf32>
    %116 = arith.addf %114, %115 : vector<8x128xf32>
    %117 = math.tanh %116 : vector<8x128xf32>
    %118 = arith.mulf %113, %117 : vector<8x128xf32>
    %c3 = arith.constant 3 : index
    %c0_46 = arith.constant 0 : index
    %c0_47 = arith.constant 0 : index
    %119 = vector.load %arg16[%c3, %c0_46, %c0_47] : memref<8x8x512xf32, #tpu.memory_space<vmem>>, vector<1x8x512xf32>
    %120 = vector.shape_cast %119 : vector<1x8x512xf32> to vector<8x512xf32>
    %121 = arith.truncf %118 : vector<8x128xf32> to vector<8x128xbf16>
    %cst_48 = arith.constant dense<0.000000e+00> : vector<8x512xf32>
    %122 = tpu.matmul %121, %28, %cst_48 {dimension_numbers = #tpu.dot_dimension_numbers<[1], [0], [0], [1], [0, 0, 1, 1], [], []>} : vector<8x128xbf16>, vector<128x512xbf16>, vector<8x512xf32> -> vector<8x512xf32>
    %123 = arith.addf %120, %122 : vector<8x512xf32>
    %124 = vector.extract_strided_slice %123 {offsets = [0, 0], sizes = [8, 128], strides = [1, 1]} : vector<8x512xf32> to vector<8x128xf32>
    %125 = arith.negf %124 : vector<8x128xf32>
    %126 = math.exp %125 : vector<8x128xf32>
    %cst_49 = arith.constant 1.000000e+00 : f32
    %127 = vector.broadcast %cst_49 : f32 to vector<8x128xf32>
    %128 = arith.addf %127, %126 : vector<8x128xf32>
    %129 = arith.divf %127, %128 : vector<8x128xf32>
    %130 = vector.extract_strided_slice %123 {offsets = [0, 128], sizes = [8, 128], strides = [1, 1]} : vector<8x512xf32> to vector<8x128xf32>
    %131 = arith.negf %130 : vector<8x128xf32>
    %132 = math.exp %131 : vector<8x128xf32>
    %cst_50 = arith.constant 1.000000e+00 : f32
    %133 = vector.broadcast %cst_50 : f32 to vector<8x128xf32>
    %134 = arith.addf %133, %132 : vector<8x128xf32>
    %135 = arith.divf %133, %134 : vector<8x128xf32>
    %136 = vector.extract_strided_slice %123 {offsets = [0, 256], sizes = [8, 128], strides = [1, 1]} : vector<8x512xf32> to vector<8x128xf32>
    %137 = math.tanh %136 : vector<8x128xf32>
    %138 = vector.extract_strided_slice %123 {offsets = [0, 384], sizes = [8, 128], strides = [1, 1]} : vector<8x512xf32> to vector<8x128xf32>
    %139 = arith.negf %138 : vector<8x128xf32>
    %140 = math.exp %139 : vector<8x128xf32>
    %cst_51 = arith.constant 1.000000e+00 : f32
    %141 = vector.broadcast %cst_51 : f32 to vector<8x128xf32>
    %142 = arith.addf %141, %140 : vector<8x128xf32>
    %143 = arith.divf %141, %142 : vector<8x128xf32>
    %144 = arith.mulf %135, %116 : vector<8x128xf32>
    %145 = arith.mulf %129, %137 : vector<8x128xf32>
    %146 = arith.addf %144, %145 : vector<8x128xf32>
    %147 = math.tanh %146 : vector<8x128xf32>
    %148 = arith.mulf %143, %147 : vector<8x128xf32>
    %c4 = arith.constant 4 : index
    %c0_52 = arith.constant 0 : index
    %c0_53 = arith.constant 0 : index
    %149 = vector.load %arg16[%c4, %c0_52, %c0_53] : memref<8x8x512xf32, #tpu.memory_space<vmem>>, vector<1x8x512xf32>
    %150 = vector.shape_cast %149 : vector<1x8x512xf32> to vector<8x512xf32>
    %151 = arith.truncf %148 : vector<8x128xf32> to vector<8x128xbf16>
    %cst_54 = arith.constant dense<0.000000e+00> : vector<8x512xf32>
    %152 = tpu.matmul %151, %28, %cst_54 {dimension_numbers = #tpu.dot_dimension_numbers<[1], [0], [0], [1], [0, 0, 1, 1], [], []>} : vector<8x128xbf16>, vector<128x512xbf16>, vector<8x512xf32> -> vector<8x512xf32>
    %153 = arith.addf %150, %152 : vector<8x512xf32>
    %154 = vector.extract_strided_slice %153 {offsets = [0, 0], sizes = [8, 128], strides = [1, 1]} : vector<8x512xf32> to vector<8x128xf32>
    %155 = arith.negf %154 : vector<8x128xf32>
    %156 = math.exp %155 : vector<8x128xf32>
    %cst_55 = arith.constant 1.000000e+00 : f32
    %157 = vector.broadcast %cst_55 : f32 to vector<8x128xf32>
    %158 = arith.addf %157, %156 : vector<8x128xf32>
    %159 = arith.divf %157, %158 : vector<8x128xf32>
    %160 = vector.extract_strided_slice %153 {offsets = [0, 128], sizes = [8, 128], strides = [1, 1]} : vector<8x512xf32> to vector<8x128xf32>
    %161 = arith.negf %160 : vector<8x128xf32>
    %162 = math.exp %161 : vector<8x128xf32>
    %cst_56 = arith.constant 1.000000e+00 : f32
    %163 = vector.broadcast %cst_56 : f32 to vector<8x128xf32>
    %164 = arith.addf %163, %162 : vector<8x128xf32>
    %165 = arith.divf %163, %164 : vector<8x128xf32>
    %166 = vector.extract_strided_slice %153 {offsets = [0, 256], sizes = [8, 128], strides = [1, 1]} : vector<8x512xf32> to vector<8x128xf32>
    %167 = math.tanh %166 : vector<8x128xf32>
    %168 = vector.extract_strided_slice %153 {offsets = [0, 384], sizes = [8, 128], strides = [1, 1]} : vector<8x512xf32> to vector<8x128xf32>
    %169 = arith.negf %168 : vector<8x128xf32>
    %170 = math.exp %169 : vector<8x128xf32>
    %cst_57 = arith.constant 1.000000e+00 : f32
    %171 = vector.broadcast %cst_57 : f32 to vector<8x128xf32>
    %172 = arith.addf %171, %170 : vector<8x128xf32>
    %173 = arith.divf %171, %172 : vector<8x128xf32>
    %174 = arith.mulf %165, %146 : vector<8x128xf32>
    %175 = arith.mulf %159, %167 : vector<8x128xf32>
    %176 = arith.addf %174, %175 : vector<8x128xf32>
    %177 = math.tanh %176 : vector<8x128xf32>
    %178 = arith.mulf %173, %177 : vector<8x128xf32>
    %c5 = arith.constant 5 : index
    %c0_58 = arith.constant 0 : index
    %c0_59 = arith.constant 0 : index
    %179 = vector.load %arg16[%c5, %c0_58, %c0_59] : memref<8x8x512xf32, #tpu.memory_space<vmem>>, vector<1x8x512xf32>
    %180 = vector.shape_cast %179 : vector<1x8x512xf32> to vector<8x512xf32>
    %181 = arith.truncf %178 : vector<8x128xf32> to vector<8x128xbf16>
    %cst_60 = arith.constant dense<0.000000e+00> : vector<8x512xf32>
    %182 = tpu.matmul %181, %28, %cst_60 {dimension_numbers = #tpu.dot_dimension_numbers<[1], [0], [0], [1], [0, 0, 1, 1], [], []>} : vector<8x128xbf16>, vector<128x512xbf16>, vector<8x512xf32> -> vector<8x512xf32>
    %183 = arith.addf %180, %182 : vector<8x512xf32>
    %184 = vector.extract_strided_slice %183 {offsets = [0, 0], sizes = [8, 128], strides = [1, 1]} : vector<8x512xf32> to vector<8x128xf32>
    %185 = arith.negf %184 : vector<8x128xf32>
    %186 = math.exp %185 : vector<8x128xf32>
    %cst_61 = arith.constant 1.000000e+00 : f32
    %187 = vector.broadcast %cst_61 : f32 to vector<8x128xf32>
    %188 = arith.addf %187, %186 : vector<8x128xf32>
    %189 = arith.divf %187, %188 : vector<8x128xf32>
    %190 = vector.extract_strided_slice %183 {offsets = [0, 128], sizes = [8, 128], strides = [1, 1]} : vector<8x512xf32> to vector<8x128xf32>
    %191 = arith.negf %190 : vector<8x128xf32>
    %192 = math.exp %191 : vector<8x128xf32>
    %cst_62 = arith.constant 1.000000e+00 : f32
    %193 = vector.broadcast %cst_62 : f32 to vector<8x128xf32>
    %194 = arith.addf %193, %192 : vector<8x128xf32>
    %195 = arith.divf %193, %194 : vector<8x128xf32>
    %196 = vector.extract_strided_slice %183 {offsets = [0, 256], sizes = [8, 128], strides = [1, 1]} : vector<8x512xf32> to vector<8x128xf32>
    %197 = math.tanh %196 : vector<8x128xf32>
    %198 = vector.extract_strided_slice %183 {offsets = [0, 384], sizes = [8, 128], strides = [1, 1]} : vector<8x512xf32> to vector<8x128xf32>
    %199 = arith.negf %198 : vector<8x128xf32>
    %200 = math.exp %199 : vector<8x128xf32>
    %cst_63 = arith.constant 1.000000e+00 : f32
    %201 = vector.broadcast %cst_63 : f32 to vector<8x128xf32>
    %202 = arith.addf %201, %200 : vector<8x128xf32>
    %203 = arith.divf %201, %202 : vector<8x128xf32>
    %204 = arith.mulf %195, %176 : vector<8x128xf32>
    %205 = arith.mulf %189, %197 : vector<8x128xf32>
    %206 = arith.addf %204, %205 : vector<8x128xf32>
    %207 = math.tanh %206 : vector<8x128xf32>
    %208 = arith.mulf %203, %207 : vector<8x128xf32>
    %c6 = arith.constant 6 : index
    %c0_64 = arith.constant 0 : index
    %c0_65 = arith.constant 0 : index
    %209 = vector.load %arg16[%c6, %c0_64, %c0_65] : memref<8x8x512xf32, #tpu.memory_space<vmem>>, vector<1x8x512xf32>
    %210 = vector.shape_cast %209 : vector<1x8x512xf32> to vector<8x512xf32>
    %211 = arith.truncf %208 : vector<8x128xf32> to vector<8x128xbf16>
    %cst_66 = arith.constant dense<0.000000e+00> : vector<8x512xf32>
    %212 = tpu.matmul %211, %28, %cst_66 {dimension_numbers = #tpu.dot_dimension_numbers<[1], [0], [0], [1], [0, 0, 1, 1], [], []>} : vector<8x128xbf16>, vector<128x512xbf16>, vector<8x512xf32> -> vector<8x512xf32>
    %213 = arith.addf %210, %212 : vector<8x512xf32>
    %214 = vector.extract_strided_slice %213 {offsets = [0, 0], sizes = [8, 128], strides = [1, 1]} : vector<8x512xf32> to vector<8x128xf32>
    %215 = arith.negf %214 : vector<8x128xf32>
    %216 = math.exp %215 : vector<8x128xf32>
    %cst_67 = arith.constant 1.000000e+00 : f32
    %217 = vector.broadcast %cst_67 : f32 to vector<8x128xf32>
    %218 = arith.addf %217, %216 : vector<8x128xf32>
    %219 = arith.divf %217, %218 : vector<8x128xf32>
    %220 = vector.extract_strided_slice %213 {offsets = [0, 128], sizes = [8, 128], strides = [1, 1]} : vector<8x512xf32> to vector<8x128xf32>
    %221 = arith.negf %220 : vector<8x128xf32>
    %222 = math.exp %221 : vector<8x128xf32>
    %cst_68 = arith.constant 1.000000e+00 : f32
    %223 = vector.broadcast %cst_68 : f32 to vector<8x128xf32>
    %224 = arith.addf %223, %222 : vector<8x128xf32>
    %225 = arith.divf %223, %224 : vector<8x128xf32>
    %226 = vector.extract_strided_slice %213 {offsets = [0, 256], sizes = [8, 128], strides = [1, 1]} : vector<8x512xf32> to vector<8x128xf32>
    %227 = math.tanh %226 : vector<8x128xf32>
    %228 = vector.extract_strided_slice %213 {offsets = [0, 384], sizes = [8, 128], strides = [1, 1]} : vector<8x512xf32> to vector<8x128xf32>
    %229 = arith.negf %228 : vector<8x128xf32>
    %230 = math.exp %229 : vector<8x128xf32>
    %cst_69 = arith.constant 1.000000e+00 : f32
    %231 = vector.broadcast %cst_69 : f32 to vector<8x128xf32>
    %232 = arith.addf %231, %230 : vector<8x128xf32>
    %233 = arith.divf %231, %232 : vector<8x128xf32>
    %234 = arith.mulf %225, %206 : vector<8x128xf32>
    %235 = arith.mulf %219, %227 : vector<8x128xf32>
    %236 = arith.addf %234, %235 : vector<8x128xf32>
    %237 = math.tanh %236 : vector<8x128xf32>
    %238 = arith.mulf %233, %237 : vector<8x128xf32>
    %c7 = arith.constant 7 : index
    %c0_70 = arith.constant 0 : index
    %c0_71 = arith.constant 0 : index
    %239 = vector.load %arg16[%c7, %c0_70, %c0_71] : memref<8x8x512xf32, #tpu.memory_space<vmem>>, vector<1x8x512xf32>
    %240 = vector.shape_cast %239 : vector<1x8x512xf32> to vector<8x512xf32>
    %241 = arith.truncf %238 : vector<8x128xf32> to vector<8x128xbf16>
    %cst_72 = arith.constant dense<0.000000e+00> : vector<8x512xf32>
    %242 = tpu.matmul %241, %28, %cst_72 {dimension_numbers = #tpu.dot_dimension_numbers<[1], [0], [0], [1], [0, 0, 1, 1], [], []>} : vector<8x128xbf16>, vector<128x512xbf16>, vector<8x512xf32> -> vector<8x512xf32>
    %243 = arith.addf %240, %242 : vector<8x512xf32>
    %244 = vector.extract_strided_slice %243 {offsets = [0, 0], sizes = [8, 128], strides = [1, 1]} : vector<8x512xf32> to vector<8x128xf32>
    %245 = arith.negf %244 : vector<8x128xf32>
    %246 = math.exp %245 : vector<8x128xf32>
    %cst_73 = arith.constant 1.000000e+00 : f32
    %247 = vector.broadcast %cst_73 : f32 to vector<8x128xf32>
    %248 = arith.addf %247, %246 : vector<8x128xf32>
    %249 = arith.divf %247, %248 : vector<8x128xf32>
    %250 = vector.extract_strided_slice %243 {offsets = [0, 128], sizes = [8, 128], strides = [1, 1]} : vector<8x512xf32> to vector<8x128xf32>
    %251 = arith.negf %250 : vector<8x128xf32>
    %252 = math.exp %251 : vector<8x128xf32>
    %cst_74 = arith.constant 1.000000e+00 : f32
    %253 = vector.broadcast %cst_74 : f32 to vector<8x128xf32>
    %254 = arith.addf %253, %252 : vector<8x128xf32>
    %255 = arith.divf %253, %254 : vector<8x128xf32>
    %256 = vector.extract_strided_slice %243 {offsets = [0, 256], sizes = [8, 128], strides = [1, 1]} : vector<8x512xf32> to vector<8x128xf32>
    %257 = math.tanh %256 : vector<8x128xf32>
    %258 = vector.extract_strided_slice %243 {offsets = [0, 384], sizes = [8, 128], strides = [1, 1]} : vector<8x512xf32> to vector<8x128xf32>
    %259 = arith.negf %258 : vector<8x128xf32>
    %260 = math.exp %259 : vector<8x128xf32>
    %cst_75 = arith.constant 1.000000e+00 : f32
    %261 = vector.broadcast %cst_75 : f32 to vector<8x128xf32>
    %262 = arith.addf %261, %260 : vector<8x128xf32>
    %263 = arith.divf %261, %262 : vector<8x128xf32>
    %264 = arith.mulf %255, %236 : vector<8x128xf32>
    %265 = arith.mulf %249, %257 : vector<8x128xf32>
    %266 = arith.addf %264, %265 : vector<8x128xf32>
    %267 = math.tanh %266 : vector<8x128xf32>
    %268 = arith.mulf %263, %267 : vector<8x128xf32>
    %269 = arith.truncf %268 : vector<8x128xf32> to vector<8x128xbf16>
    %c0_76 = arith.constant 0 : index
    %c0_77 = arith.constant 0 : index
    %270 = vector.load %arg11[%c0_76, %c0_77] : memref<128x128xbf16, #tpu.memory_space<vmem>>, vector<128x128xbf16>
    %cst_78 = arith.constant dense<0.000000e+00> : vector<8x128xf32>
    %271 = tpu.matmul %269, %270, %cst_78 {dimension_numbers = #tpu.dot_dimension_numbers<[1], [0], [0], [1], [0, 0, 1, 1], [], []>} : vector<8x128xbf16>, vector<128x128xbf16>, vector<8x128xf32> -> vector<8x128xf32>
    %c0_79 = arith.constant 0 : index
    %c0_80 = arith.constant 0 : index
    %272 = vector.load %arg12[%c0_79, %c0_80] : memref<1x128xf32, #tpu.memory_space<vmem>>, vector<1x128xf32>
    %273 = vector.broadcast %272 : vector<1x128xf32> to vector<8x128xf32>
    %274 = arith.addf %271, %273 : vector<8x128xf32>
    %275 = tpu.iota {dimensions = array<i32: 1>} : vector<8x128xi32>
    %c51_i32 = arith.constant 51 : i32
    %276 = vector.broadcast %c51_i32 : i32 to vector<8x128xi32>
    %277 = arith.cmpi sge, %275, %276 : vector<8x128xi32>
    %c68_i32 = arith.constant 68 : i32
    %278 = vector.broadcast %c68_i32 : i32 to vector<8x128xi32>
    %279 = arith.cmpi slt, %275, %278 : vector<8x128xi32>
    %280 = arith.andi %277, %279 : vector<8x128xi1>
    %281 = arith.negf %274 : vector<8x128xf32>
    %282 = math.exp %281 : vector<8x128xf32>
    %cst_81 = arith.constant 1.000000e+00 : f32
    %283 = vector.broadcast %cst_81 : f32 to vector<8x128xf32>
    %284 = arith.addf %283, %282 : vector<8x128xf32>
    %285 = arith.divf %283, %284 : vector<8x128xf32>
    %286 = arith.select %280, %285, %274 : vector<8x128xi1>, vector<8x128xf32>
    %c0_82 = arith.constant 0 : index
    %c0_83 = arith.constant 0 : index
    %287 = vector.load %arg13[%c0_82, %c0_83] : memref<8x128xf32, #tpu.memory_space<vmem>>, vector<8x128xf32>
    tpu.vector_store %arg13[%c0_82, %c0_83], %286 {strides = array<i32>} : memref<8x128xf32, #tpu.memory_space<vmem>>, vector<8x128xf32>,
    %c0_84 = arith.constant 0 : index
    %c0_85 = arith.constant 0 : index
    %288 = vector.load %arg14[%c0_84, %c0_85] : memref<8x128xf32, #tpu.memory_space<vmem>>, vector<8x128xf32>
    tpu.vector_store %arg14[%c0_84, %c0_85], %268 {strides = array<i32>} : memref<8x128xf32, #tpu.memory_space<vmem>>, vector<8x128xf32>,
    %c0_86 = arith.constant 0 : index
    %c0_87 = arith.constant 0 : index
    %289 = vector.load %arg15[%c0_86, %c0_87] : memref<8x128xf32, #tpu.memory_space<vmem>>, vector<8x128xf32>
    tpu.vector_store %arg15[%c0_86, %c0_87], %266 {strides = array<i32>} : memref<8x128xf32, #tpu.memory_space<vmem>>, vector<8x128xf32>,
    return
  }
  func.func @transform_0(%arg0: i32) -> (i32, i32, i32) {
    %c0_i32 = arith.constant 0 : i32
    %c0_i32_0 = arith.constant 0 : i32
    %c0_i32_1 = arith.constant 0 : i32
    return %c0_i32, %arg0, %c0_i32_0 : i32, i32, i32
  }
  func.func @transform_1(%arg0: i32) -> (i32, i32) {
    %c0_i32 = arith.constant 0 : i32
    %c0_i32_0 = arith.constant 0 : i32
    return %arg0, %c0_i32 : i32, i32
  }
  func.func @transform_2(%arg0: i32) -> (i32, i32) {
    %c0_i32 = arith.constant 0 : i32
    %c0_i32_0 = arith.constant 0 : i32
    return %arg0, %c0_i32 : i32, i32
  }
  func.func @transform_3(%arg0: i32) -> (i32, i32) {
    %c0_i32 = arith.constant 0 : i32
    %c0_i32_0 = arith.constant 0 : i32
    %c0_i32_1 = arith.constant 0 : i32
    return %c0_i32, %c0_i32_0 : i32, i32
  }
  func.func @transform_4(%arg0: i32) -> (i32, i32) {
    %c0_i32 = arith.constant 0 : i32
    %c0_i32_0 = arith.constant 0 : i32
    %c0_i32_1 = arith.constant 0 : i32
    return %c0_i32, %c0_i32_0 : i32, i32
  }
  func.func @transform_5(%arg0: i32) -> (i32, i32) {
    %c0_i32 = arith.constant 0 : i32
    %c0_i32_0 = arith.constant 0 : i32
    %c0_i32_1 = arith.constant 0 : i32
    return %c0_i32, %c0_i32_0 : i32, i32
  }
  func.func @transform_6(%arg0: i32) -> (i32, i32) {
    %c0_i32 = arith.constant 0 : i32
    %c0_i32_0 = arith.constant 0 : i32
    %c0_i32_1 = arith.constant 0 : i32
    return %c0_i32, %c0_i32_0 : i32, i32
  }
  func.func @transform_7(%arg0: i32) -> (i32, i32) {
    %c0_i32 = arith.constant 0 : i32
    %c0_i32_0 = arith.constant 0 : i32
    %c0_i32_1 = arith.constant 0 : i32
    return %c0_i32, %c0_i32_0 : i32, i32
  }
  func.func @transform_8(%arg0: i32) -> (i32, i32) {
    %c0_i32 = arith.constant 0 : i32
    %c0_i32_0 = arith.constant 0 : i32
    %c0_i32_1 = arith.constant 0 : i32
    return %c0_i32, %c0_i32_0 : i32, i32
  }
  func.func @transform_9(%arg0: i32) -> (i32, i32) {
    %c0_i32 = arith.constant 0 : i32
    %c0_i32_0 = arith.constant 0 : i32
    %c0_i32_1 = arith.constant 0 : i32
    return %c0_i32, %c0_i32_0 : i32, i32
  }
  func.func @transform_10(%arg0: i32) -> (i32, i32) {
    %c0_i32 = arith.constant 0 : i32
    %c0_i32_0 = arith.constant 0 : i32
    %c0_i32_1 = arith.constant 0 : i32
    return %c0_i32, %c0_i32_0 : i32, i32
  }
  func.func @transform_11(%arg0: i32) -> (i32, i32) {
    %c0_i32 = arith.constant 0 : i32
    %c0_i32_0 = arith.constant 0 : i32
    %c0_i32_1 = arith.constant 0 : i32
    return %c0_i32, %c0_i32_0 : i32, i32
  }
  func.func @transform_12(%arg0: i32) -> (i32, i32) {
    %c0_i32 = arith.constant 0 : i32
    %c0_i32_0 = arith.constant 0 : i32
    return %arg0, %c0_i32 : i32, i32
  }
  func.func @transform_13(%arg0: i32) -> (i32, i32) {
    %c0_i32 = arith.constant 0 : i32
    %c0_i32_0 = arith.constant 0 : i32
    return %arg0, %c0_i32 : i32, i32
  }
  func.func @transform_14(%arg0: i32) -> (i32, i32) {
    %c0_i32 = arith.constant 0 : i32
    %c0_i32_0 = arith.constant 0 : i32
    return %arg0, %c0_i32 : i32, i32
  }
}

</mosaic_0001>

<llo_original>
// kernel: pose_estimator_forward.1
$region0: #{pose_estimator_forward.1}
  #allocation0 [shape = 'u32[]', space=smem, size = 0x4, offset = 0x4, fixed_abs, tag = 'smem constant byte address 0x4 - core index']
  #allocation1 [shape = 'u32[144,128]{1,0:T(1,128)}', space=vmem, size = 0x12000, scoped, tag = 'internal scratch']
  #allocation2 [shape = 'f32[8,8,512]{2,1,0:T(8,128)}', space=vmem, size = 0x20000, scoped, tag = 'scratch operand']
  %s0 = inlined_call_operand.vmem [shape: f32[8,8,128], index: 0, kind: input, shape index: {}]
  %s1 = inlined_call_operand.vmem [shape: f32[8,128], index: 1, kind: input, shape index: {}, may-alias: {1,2}]
  %s2 = inlined_call_operand.vmem [shape: f32[8,128], index: 2, kind: input, shape index: {}, may-alias: {1,2}]
  %s3 = inlined_call_operand.vmem [shape: bf16[128,128], index: 3, kind: input, shape index: {}]
  %s4 = inlined_call_operand.vmem [shape: f32[1,128], index: 4, kind: input, shape index: {}]
  %s5 = inlined_call_operand.vmem [shape: bf16[128,128], index: 5, kind: input, shape index: {}]
  %s6 = inlined_call_operand.hbm [shape: f32[1,128], index: 6, kind: input, shape index: {}]
  %s7 = inlined_call_operand.hbm [shape: bf16[128,512], index: 7, kind: input, shape index: {}]
  %s8 = inlined_call_operand.hbm [shape: bf16[128,512], index: 8, kind: input, shape index: {}]
  %s9 = inlined_call_operand.vmem [shape: f32[1,512], index: 9, kind: input, shape index: {}]
  %s10 = inlined_call_operand.hbm [shape: bf16[128,128], index: 10, kind: input, shape index: {}]
  %s11 = inlined_call_operand.hbm [shape: f32[1,128], index: 11, kind: input, shape index: {}]
  %s12 = inlined_call_operand.vmem [shape: f32[8,128], index: 12, kind: output, shape index: {0}]
  %s13 = inlined_call_operand.vmem [shape: f32[8,128], index: 13, kind: output, shape index: {1}]
  %s14 = inlined_call_operand.vmem [shape: f32[8,128], index: 14, kind: output, shape index: {2}]
  %15 = xla_tuple %s12, %s13, %s14
  %s16 = sld [smem:[#allocation0]]
  $region94: #{pose_estimator_forward.1} parent=0
    _
  %s18 = ssub.s32 1, %s16
  %s19 = scalar_select 0, %s18, %s16
  $region1: #{pose_estimator_forward.1} parent=0
    #allocation3 [shape = 'u8[512]{0}', space=vmem, size = 0x400, scoped, tag = 'input window, operand 6, single buffered']
    #allocation4 [shape = 's32[1]{0}', space=sflag, size = 0x4, scoped, tag = 'scoped memory for pose_estimator_forward.1']
    #allocation5 [shape = 'u8[131072]{0}', space=vmem, size = 0x20000, scoped, tag = 'input window, operand 7, single buffered']
    #allocation6 [shape = 's32[1]{0}', space=sflag, size = 0x4, scoped, tag = 'scoped memory for pose_estimator_forward.1']
    #allocation7 [shape = 'u8[131072]{0}', space=vmem, size = 0x20000, scoped, tag = 'input window, operand 8, single buffered']
    #allocation8 [shape = 'u8[32768]{0}', space=vmem, size = 0x8000, scoped, tag = 'input window, operand 10, single buffered']
    #allocation9 [shape = 's32[1]{0}', space=sflag, size = 0x4, scoped, tag = 'scoped memory for pose_estimator_forward.1']
    #allocation10 [shape = 'u8[512]{0}', space=vmem, size = 0x400, scoped, tag = 'input window, operand 11, single buffered']
    %20 = vsyncpa [#allocation4], 0
    %21 = vsyncpa [#allocation6], 0
    %22 = vsyncpa [#allocation9], 0
    // Predicated region
    $region2: #{pose_estimator_forward.1} parent=1 // pred_check
      _
    $region3: #{pose_estimator_forward.1} parent=1 // pred_check_branch
      %24 = sbr.rel (0) target = $region5
    $region4: #{pose_estimator_forward.1} parent=1 // pred_region
      _
    $region5: #{pose_estimator_forward.1} parent=1 // pred_fallthru
      _
    // Predicated region
    $region6: #{pose_estimator_forward.1} parent=1 // pred_check
      _
    $region7: #{pose_estimator_forward.1} parent=1 // pred_check_branch
      %26 = sbr.rel (0) target = $region9
    $region8: #{pose_estimator_forward.1} parent=1 // pred_region
      _
    $region9: #{pose_estimator_forward.1} parent=1 // pred_fallthru
      _
    // Predicated region
    $region10: #{pose_estimator_forward.1} parent=1 // pred_check
      _
    $region11: #{pose_estimator_forward.1} parent=1 // pred_check_branch
      %28 = sbr.rel (0) target = $region13
    $region12: #{pose_estimator_forward.1} parent=1 // pred_region
      _
    $region13: #{pose_estimator_forward.1} parent=1 // pred_fallthru
      _
    // Predicated region
    $region14: #{pose_estimator_forward.1} parent=1 // pred_check
      _
    $region15: #{pose_estimator_forward.1} parent=1 // pred_check_branch
      %30 = sbr.rel (0) target = $region17
    $region16: #{pose_estimator_forward.1} parent=1 // pred_region
      _
    $region17: #{pose_estimator_forward.1} parent=1 // pred_fallthru
      _
    // Predicated region
    $region18: #{pose_estimator_forward.1} parent=1 // pred_check
      _
    $region19: #{pose_estimator_forward.1} parent=1 // pred_check_branch
      %32 = sbr.rel (0) target = $region21
    $region20: #{pose_estimator_forward.1} parent=1 // pred_region
      _
    $region21: #{pose_estimator_forward.1} parent=1 // pred_fallthru
      _
    // Predicated region
    $region22: #{pose_estimator_forward.1} parent=1 // pred_check
      _
    $region23: #{pose_estimator_forward.1} parent=1 // pred_check_branch
      %34 = sbr.rel (0) target = $region25
    $region24: #{pose_estimator_forward.1} parent=1 // pred_region
      _
    $region25: #{pose_estimator_forward.1} parent=1 // pred_fallthru
      _
    // Predicated region
    $region26: #{pose_estimator_forward.1} parent=1 // pred_check
      _
    $region27: #{pose_estimator_forward.1} parent=1 // pred_check_branch
      %36 = sbr.rel (0) target = $region29
    $region28: #{pose_estimator_forward.1} parent=1 // pred_region
      %s38 = ssub.s32 16, 16
      %39 = vsyncadd [#allocation4], %s38
      %s41 = sshll.u32 [#allocation3], 4
      %s42 = int_to_ptr.vmem [resolvable:$true] %s41
      %44 = dma.hbm_to_vmem [thread:$0]  %s6, 16, %s42, [#allocation4]
    $region29: #{pose_estimator_forward.1} parent=1 // pred_fallthru
      _
    // Predicated region
    $region30: #{pose_estimator_forward.1} parent=1 // pred_check
      _
    $region31: #{pose_estimator_forward.1} parent=1 // pred_check_branch
      %46 = sbr.rel (0) target = $region33
    $region32: #{pose_estimator_forward.1} parent=1 // pred_region
      %s48 = ssub.s32 4096, 4096
      %49 = vsyncadd [#allocation6], %s48
      %s50 = sshll.u32 [#allocation5], 4
      %s51 = int_to_ptr.vmem [resolvable:$true] %s50
      %56 = dma.hbm_to_vmem [thread:$0]  %s7, 4096, %s51, [#allocation6], 256, 256, 16
    $region33: #{pose_estimator_forward.1} parent=1 // pred_fallthru
      _
    // Predicated region
    $region34: #{pose_estimator_forward.1} parent=1 // pred_check
      _
    $region35: #{pose_estimator_forward.1} parent=1 // pred_check_branch
      %58 = sbr.rel (0) target = $region37
    $region36: #{pose_estimator_forward.1} parent=1 // pred_region
      %s60 = ssub.s32 4096, 4096
      %61 = vsyncadd [#allocation6], %s60
      %s62 = sshll.u32 [#allocation7], 4
      %s63 = int_to_ptr.vmem [resolvable:$true] %s62
      %68 = dma.hbm_to_vmem [thread:$0]  %s8, 4096, %s63, [#allocation6], 256, 256, 16
    $region37: #{pose_estimator_forward.1} parent=1 // pred_fallthru
      _
    // Predicated region
    $region38: #{pose_estimator_forward.1} parent=1 // pred_check
      _
    $region39: #{pose_estimator_forward.1} parent=1 // pred_check_branch
      %70 = sbr.rel (0) target = $region41
    $region40: #{pose_estimator_forward.1} parent=1 // pred_region
      _
    $region41: #{pose_estimator_forward.1} parent=1 // pred_fallthru
      _
    // Predicated region
    $region42: #{pose_estimator_forward.1} parent=1 // pred_check
      _
    $region43: #{pose_estimator_forward.1} parent=1 // pred_check_branch
      %72 = sbr.rel (0) target = $region45
    $region44: #{pose_estimator_forward.1} parent=1 // pred_region
      %s74 = ssub.s32 1024, 1024
      %75 = vsyncadd [#allocation9], %s74
      %s76 = sshll.u32 [#allocation8], 4
      %s77 = int_to_ptr.vmem [resolvable:$true] %s76
      %82 = dma.hbm_to_vmem [thread:$0]  %s10, 1024, %s77, [#allocation9], 64, 64, 4
    $region45: #{pose_estimator_forward.1} parent=1 // pred_fallthru
      _
    // Predicated region
    $region46: #{pose_estimator_forward.1} parent=1 // pred_check
      _
    $region47: #{pose_estimator_forward.1} parent=1 // pred_check_branch
      %84 = sbr.rel (0) target = $region49
    $region48: #{pose_estimator_forward.1} parent=1 // pred_region
      %s86 = ssub.s32 16, 16
      %87 = vsyncadd [#allocation9], %s86
      %s89 = sshll.u32 [#allocation10], 4
      %s90 = int_to_ptr.vmem [resolvable:$true] %s89
      %92 = dma.hbm_to_vmem [thread:$0]  %s11, 16, %s90, [#allocation9]
    $region49: #{pose_estimator_forward.1} parent=1 // pred_fallthru
      _
    // Predicated region
    $region50: #{pose_estimator_forward.1} parent=1 // pred_check
      _
    $region51: #{pose_estimator_forward.1} parent=1 // pred_check_branch
      %94 = sbr.rel (0) target = $region53
    $region52: #{pose_estimator_forward.1} parent=1 // pred_region
      %95 = dma.done [#allocation4], 16
    $region53: #{pose_estimator_forward.1} parent=1 // pred_fallthru
      _
    // Predicated region
    $region54: #{pose_estimator_forward.1} parent=1 // pred_check
      _
    $region55: #{pose_estimator_forward.1} parent=1 // pred_check_branch
      %97 = sbr.rel (0) target = $region57
    $region56: #{pose_estimator_forward.1} parent=1 // pred_region
      %98 = dma.done [#allocation6], 4096
    $region57: #{pose_estimator_forward.1} parent=1 // pred_fallthru
      _
    // Predicated region
    $region58: #{pose_estimator_forward.1} parent=1 // pred_check
      _
    $region59: #{pose_estimator_forward.1} parent=1 // pred_check_branch
      %100 = sbr.rel (0) target = $region61
    $region60: #{pose_estimator_forward.1} parent=1 // pred_region
      %101 = dma.done [#allocation6], 4096
    $region61: #{pose_estimator_forward.1} parent=1 // pred_fallthru
      _
    // Predicated region
    $region62: #{pose_estimator_forward.1} parent=1 // pred_check
      _
    $region63: #{pose_estimator_forward.1} parent=1 // pred_check_branch
      %103 = sbr.rel (0) target = $region65
    $region64: #{pose_estimator_forward.1} parent=1 // pred_region
      %104 = dma.done [#allocation9], 1024
    $region65: #{pose_estimator_forward.1} parent=1 // pred_fallthru
      _
    // Predicated region
    $region66: #{pose_estimator_forward.1} parent=1 // pred_check
      _
    $region67: #{pose_estimator_forward.1} parent=1 // pred_check_branch
      %106 = sbr.rel (0) target = $region69
    $region68: #{pose_estimator_forward.1} parent=1 // pred_region
      %107 = dma.done [#allocation9], 16
    $region69: #{pose_estimator_forward.1} parent=1 // pred_fallthru
      _
    %v109 = vld [vmem:[%s0] sm:$0xff]
    %v110 = vld [vmem:[%s0 + $0x8] sm:$0xff]
    %v111 = vld [vmem:[%s0 + $0x10] sm:$0xff]
    %v112 = vld [vmem:[%s0 + $0x18] sm:$0xff]
    %v113 = vld [vmem:[%s0 + $0x20] sm:$0xff]
    %v114 = vld [vmem:[%s0 + $0x28] sm:$0xff]
    %v115 = vld [vmem:[%s0 + $0x30] sm:$0xff]
    %v116 = vld [vmem:[%s0 + $0x38] sm:$0xff]
    %v117 = vpack.c.bf16 %v110, %v109
    %v118 = vpack.c.bf16 %v112, %v111
    %v119 = vpack.c.bf16 %v114, %v113
    %v120 = vpack.c.bf16 %v116, %v115
    %v121 = vld [vmem:[%s3] sm:$0xf]
    %v122 = vld [vmem:[%s3 + $0x4] sm:$0xf]
    %v123 = vld [vmem:[%s3 + $0x8] sm:$0xf]
    %v124 = vld [vmem:[%s3 + $0xc] sm:$0xf]
    %v125 = vld [vmem:[%s3 + $0x10] sm:$0xf]
    %v126 = vld [vmem:[%s3 + $0x14] sm:$0xf]
    %v127 = vld [vmem:[%s3 + $0x18] sm:$0xf]
    %v128 = vld [vmem:[%s3 + $0x1c] sm:$0xf]
    %v129 = vld [vmem:[%s3 + $0x20] sm:$0xf]
    %v130 = vld [vmem:[%s3 + $0x24] sm:$0xf]
    %v131 = vld [vmem:[%s3 + $0x28] sm:$0xf]
    %v132 = vld [vmem:[%s3 + $0x2c] sm:$0xf]
    %v133 = vld [vmem:[%s3 + $0x30] sm:$0xf]
    %v134 = vld [vmem:[%s3 + $0x34] sm:$0xf]
    %v135 = vld [vmem:[%s3 + $0x38] sm:$0xf]
    %v136 = vld [vmem:[%s3 + $0x3c] sm:$0xf]
    %v137 = vld [vmem:[%s4] sm:$0x1]
    %v139 = vlaneseq
    %v140 = vshrl.u32 %v139, 7
    %v141 = vsub.s32 0, %v140
    %v142 = vrot.slane %v137, %v141
    %v160 = vunpack.c.l.b16 %v121
    %v161 = vunpack.c.l.b16 %v122
    %v162 = vunpack.c.l.b16 %v123
    %v163 = vunpack.c.l.b16 %v124
    %v164 = vunpack.c.l.b16 %v125
    %v165 = vunpack.c.l.b16 %v126
    %v166 = vunpack.c.l.b16 %v127
    %v167 = vunpack.c.l.b16 %v128
    %v168 = vunpack.c.l.b16 %v129
    %v169 = vunpack.c.l.b16 %v130
    %v170 = vunpack.c.l.b16 %v131
    %v171 = vunpack.c.l.b16 %v132
    %v172 = vunpack.c.l.b16 %v133
    %v173 = vunpack.c.l.b16 %v134
    %v174 = vunpack.c.l.b16 %v135
    %v175 = vunpack.c.l.b16 %v136
    %v176 = vpack.c.b16 %v161, %v160
    %v177 = vpack.c.b16 %v163, %v162
    %v178 = vpack.c.b16 %v165, %v164
    %v179 = vpack.c.b16 %v167, %v166
    %v180 = vpack.c.b16 %v169, %v168
    %v181 = vpack.c.b16 %v171, %v170
    %v182 = vpack.c.b16 %v173, %v172
    %v183 = vpack.c.b16 %v175, %v174
    %192 = vmatprep.subr.bf16.mxu0 0
    %193 = vmatpush1.bf16.msra.mxu0 %v176
    %194 = vmatprep.subr.bf16.mxu0 0
    %195 = vmatpush1.bf16.msra.mxu0 %v177
    %196 = vmatprep.subr.bf16.mxu0 0
    %197 = vmatpush1.bf16.msra.mxu0 %v178
    %198 = vmatprep.subr.bf16.mxu0 0
    %199 = vmatpush1.bf16.msra.mxu0 %v179
    %200 = vmatprep.subr.bf16.mxu0 0
    %201 = vmatpush1.bf16.msra.mxu0 %v180
    %202 = vmatprep.subr.bf16.mxu0 0
    %203 = vmatpush1.bf16.msra.mxu0 %v181
    %204 = vmatprep.subr.bf16.mxu0 0
    %205 = vmatpush1.bf16.msra.mxu0 %v182
    %206 = vmatprep.subr.bf16.mxu0 0
    %207 = vmatpush1.bf16.msra.mxu0 %v183
    %208 = vmatprep.subr.bf16.mxu0 0
    %209 = vmatpush1.bf16.msra.mxu0 0
    %210 = vmatprep.subr.bf16.mxu0 0
    %211 = vmatpush1.bf16.msra.mxu0 0
    %212 = vmatprep.subr.bf16.mxu0 0
    %213 = vmatpush1.bf16.msra.mxu0 0
    %214 = vmatprep.subr.bf16.mxu0 0
    %215 = vmatpush1.bf16.msra.mxu0 0
    %216 = vmatprep.subr.bf16.mxu0 0
    %217 = vmatpush1.bf16.msra.mxu0 0
    %218 = vmatprep.subr.bf16.mxu0 0
    %219 = vmatpush1.bf16.msra.mxu0 0
    %220 = vmatprep.subr.bf16.mxu0 0
    %221 = vmatpush1.bf16.msra.mxu0 0
    %222 = vmatprep.subr.bf16.mxu0 0
    %223 = vmatpush1.bf16.msra.mxu0 0
    %224 = vmatprep.mubr.bf16.mxu0 0
    %225 = vmatmul.mubr.bf16.gmra.mrb[0].mxu0 %v117
    %v226 = vpop.f32.mrb[0].mxu0
    %v227 = vadd.f32 %v142, %v226
    %v228 = vpop.f32.mrb[0].mxu0
    %v229 = vpop.f32.mrb[0].mxu0
    %v230 = vadd.f32 %v142, %v229
    %v231 = vpop.f32.mrb[0].mxu0
    %232 = vmatprep.mubr.bf16.mxu0 0
    %233 = vmatmul.mubr.bf16.gmra.mrb[0].mxu0 %v118
    %v234 = vpop.f32.mrb[0].mxu0
    %v235 = vadd.f32 %v142, %v234
    %v236 = vpop.f32.mrb[0].mxu0
    %v237 = vpop.f32.mrb[0].mxu0
    %v238 = vadd.f32 %v142, %v237
    %v239 = vpop.f32.mrb[0].mxu0
    %240 = vmatprep.mubr.bf16.mxu0 0
    %241 = vmatmul.mubr.bf16.gmra.mrb[0].mxu0 %v119
    %v242 = vpop.f32.mrb[0].mxu0
    %v243 = vadd.f32 %v142, %v242
    %v244 = vpop.f32.mrb[0].mxu0
    %v245 = vpop.f32.mrb[0].mxu0
    %v246 = vadd.f32 %v142, %v245
    %v247 = vpop.f32.mrb[0].mxu0
    %248 = vmatprep.mubr.bf16.mxu0 0
    %249 = vmatmul.mubr.bf16.gmra.mrb[0].mxu0 %v120
    %v250 = vpop.f32.mrb[0].mxu0
    %v251 = vadd.f32 %v142, %v250
    %v252 = vpop.f32.mrb[0].mxu0
    %v253 = vpop.f32.mrb[0].mxu0
    %v254 = vadd.f32 %v142, %v253
    %v255 = vpop.f32.mrb[0].mxu0
    %256 = vdwg.mxu0
    %v257 = vmax.f32 %v227, 0.0
    %v258 = vmax.f32 %v230, 0.0
    %v259 = vmax.f32 %v235, 0.0
    %v260 = vmax.f32 %v238, 0.0
    %v261 = vmax.f32 %v243, 0.0
    %v262 = vmax.f32 %v246, 0.0
    %v263 = vmax.f32 %v251, 0.0
    %v264 = vmax.f32 %v254, 0.0
    %v265 = vpack.c.bf16 %v258, %v257
    %v266 = vpack.c.bf16 %v260, %v259
    %v267 = vpack.c.bf16 %v262, %v261
    %v268 = vpack.c.bf16 %v264, %v263
    %v269 = vld [vmem:[%s5] sm:$0xf]
    %v270 = vld [vmem:[%s5 + $0x4] sm:$0xf]
    %v271 = vld [vmem:[%s5 + $0x8] sm:$0xf]
    %v272 = vld [vmem:[%s5 + $0xc] sm:$0xf]
    %v273 = vld [vmem:[%s5 + $0x10] sm:$0xf]
    %v274 = vld [vmem:[%s5 + $0x14] sm:$0xf]
    %v275 = vld [vmem:[%s5 + $0x18] sm:$0xf]
    %v276 = vld [vmem:[%s5 + $0x1c] sm:$0xf]
    %v277 = vld [vmem:[%s5 + $0x20] sm:$0xf]
    %v278 = vld [vmem:[%s5 + $0x24] sm:$0xf]
    %v279 = vld [vmem:[%s5 + $0x28] sm:$0xf]
    %v280 = vld [vmem:[%s5 + $0x2c] sm:$0xf]
    %v281 = vld [vmem:[%s5 + $0x30] sm:$0xf]
    %v282 = vld [vmem:[%s5 + $0x34] sm:$0xf]
    %v283 = vld [vmem:[%s5 + $0x38] sm:$0xf]
    %v284 = vld [vmem:[%s5 + $0x3c] sm:$0xf]
    %v285 = vld [vmem:[#allocation3] sm:$0x1]
    %v287 = vlaneseq
    %v288 = vshrl.u32 %v287, 7
    %v289 = vsub.s32 0, %v288
    %v290 = vrot.slane %v285, %v289
    %v308 = vunpack.c.l.b16 %v269
    %v309 = vunpack.c.l.b16 %v270
    %v310 = vunpack.c.l.b16 %v271
    %v311 = vunpack.c.l.b16 %v272
    %v312 = vunpack.c.l.b16 %v273
    %v313 = vunpack.c.l.b16 %v274
    %v314 = vunpack.c.l.b16 %v275
    %v315 = vunpack.c.l.b16 %v276
    %v316 = vunpack.c.l.b16 %v277
    %v317 = vunpack.c.l.b16 %v278
    %v318 = vunpack.c.l.b16 %v279
    %v319 = vunpack.c.l.b16 %v280
    %v320 = vunpack.c.l.b16 %v281
    %v321 = vunpack.c.l.b16 %v282
    %v322 = vunpack.c.l.b16 %v283
    %v323 = vunpack.c.l.b16 %v284
    %v324 = vpack.c.b16 %v309, %v308
    %v325 = vpack.c.b16 %v311, %v310
    %v326 = vpack.c.b16 %v313, %v312
    %v327 = vpack.c.b16 %v315, %v314
    %v328 = vpack.c.b16 %v317, %v316
    %v329 = vpack.c.b16 %v319, %v318
    %v330 = vpack.c.b16 %v321, %v320
    %v331 = vpack.c.b16 %v323, %v322
    %340 = vmatprep.subr.bf16.mxu0 0
    %341 = vmatpush1.bf16.msra.mxu0 %v324
    %342 = vmatprep.subr.bf16.mxu0 0
    %343 = vmatpush1.bf16.msra.mxu0 %v325
    %344 = vmatprep.subr.bf16.mxu0 0
    %345 = vmatpush1.bf16.msra.mxu0 %v326
    %346 = vmatprep.subr.bf16.mxu0 0
    %347 = vmatpush1.bf16.msra.mxu0 %v327
    %348 = vmatprep.subr.bf16.mxu0 0
    %349 = vmatpush1.bf16.msra.mxu0 %v328
    %350 = vmatprep.subr.bf16.mxu0 0
    %351 = vmatpush1.bf16.msra.mxu0 %v329
    %352 = vmatprep.subr.bf16.mxu0 0
    %353 = vmatpush1.bf16.msra.mxu0 %v330
    %354 = vmatprep.subr.bf16.mxu0 0
    %355 = vmatpush1.bf16.msra.mxu0 %v331
    %356 = vmatprep.subr.bf16.mxu0 0
    %357 = vmatpush1.bf16.msra.mxu0 0
    %358 = vmatprep.subr.bf16.mxu0 0
    %359 = vmatpush1.bf16.msra.mxu0 0
    %360 = vmatprep.subr.bf16.mxu0 0
    %361 = vmatpush1.bf16.msra.mxu0 0
    %362 = vmatprep.subr.bf16.mxu0 0
    %363 = vmatpush1.bf16.msra.mxu0 0
    %364 = vmatprep.subr.bf16.mxu0 0
    %365 = vmatpush1.bf16.msra.mxu0 0
    %366 = vmatprep.subr.bf16.mxu0 0
    %367 = vmatpush1.bf16.msra.mxu0 0
    %368 = vmatprep.subr.bf16.mxu0 0
    %369 = vmatpush1.bf16.msra.mxu0 0
    %370 = vmatprep.subr.bf16.mxu0 0
    %371 = vmatpush1.bf16.msra.mxu0 0
    %372 = vmatprep.mubr.bf16.mxu0 0
    %373 = vmatmul.mubr.bf16.gmra.mrb[0].mxu0 %v265
    %v374 = vpop.f32.mrb[0].mxu0
    %v375 = vadd.f32 %v290, %v374
    %v376 = vpop.f32.mrb[0].mxu0
    %v377 = vpop.f32.mrb[0].mxu0
    %v378 = vadd.f32 %v290, %v377
    %v379 = vpop.f32.mrb[0].mxu0
    %380 = vmatprep.mubr.bf16.mxu0 0
    %381 = vmatmul.mubr.bf16.gmra.mrb[0].mxu0 %v266
    %v382 = vpop.f32.mrb[0].mxu0
    %v383 = vadd.f32 %v290, %v382
    %v384 = vpop.f32.mrb[0].mxu0
    %v385 = vpop.f32.mrb[0].mxu0
    %v386 = vadd.f32 %v290, %v385
    %v387 = vpop.f32.mrb[0].mxu0
    %388 = vmatprep.mubr.bf16.mxu0 0
    %389 = vmatmul.mubr.bf16.gmra.mrb[0].mxu0 %v267
    %v390 = vpop.f32.mrb[0].mxu0
    %v391 = vadd.f32 %v290, %v390
    %v392 = vpop.f32.mrb[0].mxu0
    %v393 = vpop.f32.mrb[0].mxu0
    %v394 = vadd.f32 %v290, %v393
    %v395 = vpop.f32.mrb[0].mxu0
    %396 = vmatprep.mubr.bf16.mxu0 0
    %397 = vmatmul.mubr.bf16.gmra.mrb[0].mxu0 %v268
    %v398 = vpop.f32.mrb[0].mxu0
    %v399 = vadd.f32 %v290, %v398
    %v400 = vpop.f32.mrb[0].mxu0
    %v401 = vpop.f32.mrb[0].mxu0
    %v402 = vadd.f32 %v290, %v401
    %v403 = vpop.f32.mrb[0].mxu0
    %404 = vdwg.mxu0
    %v405 = vmax.f32 %v375, 0.0
    %v406 = vmax.f32 %v378, 0.0
    %v407 = vmax.f32 %v383, 0.0
    %v408 = vmax.f32 %v386, 0.0
    %v409 = vmax.f32 %v391, 0.0
    %v410 = vmax.f32 %v394, 0.0
    %v411 = vmax.f32 %v399, 0.0
    %v412 = vmax.f32 %v402, 0.0
    %v413 = vpack.c.bf16 %v406, %v405
    %v414 = vpack.c.bf16 %v408, %v407
    %v415 = vpack.c.bf16 %v410, %v409
    %v416 = vpack.c.bf16 %v412, %v411
    %v417 = vld [vmem:[#allocation5] sm:$0xff]
    %v418 = vld [vmem:[#allocation5 + $0x8] sm:$0xff]
    %v419 = vld [vmem:[#allocation5 + $0x10] sm:$0xff]
    %v420 = vld [vmem:[#allocation5 + $0x18] sm:$0xff]
    %v421 = vld [vmem:[#allocation5 + $0x20] sm:$0xff]
    %v422 = vld [vmem:[#allocation5 + $0x28] sm:$0xff]
    %v423 = vld [vmem:[#allocation5 + $0x30] sm:$0xff]
    %v424 = vld [vmem:[#allocation5 + $0x38] sm:$0xff]
    %v425 = vld [vmem:[#allocation5 + $0x40] sm:$0xff]
    %v426 = vld [vmem:[#allocation5 + $0x48] sm:$0xff]
    %v427 = vld [vmem:[#allocation5 + $0x50] sm:$0xff]
    %v428 = vld [vmem:[#allocation5 + $0x58] sm:$0xff]
    %v429 = vld [vmem:[#allocation5 + $0x60] sm:$0xff]
    %v430 = vld [vmem:[#allocation5 + $0x68] sm:$0xff]
    %v431 = vld [vmem:[#allocation5 + $0x70] sm:$0xff]
    %v432 = vld [vmem:[#allocation5 + $0x78] sm:$0xff]
    %v433 = vld [vmem:[#allocation5 + $0x80] sm:$0xff]
    %v434 = vld [vmem:[#allocation5 + $0x88] sm:$0xff]
    %v435 = vld [vmem:[#allocation5 + $0x90] sm:$0xff]
    %v436 = vld [vmem:[#allocation5 + $0x98] sm:$0xff]
    %v437 = vld [vmem:[#allocation5 + $0xa0] sm:$0xff]
    %v438 = vld [vmem:[#allocation5 + $0xa8] sm:$0xff]
    %v439 = vld [vmem:[#allocation5 + $0xb0] sm:$0xff]
    %v440 = vld [vmem:[#allocation5 + $0xb8] sm:$0xff]
    %v441 = vld [vmem:[#allocation5 + $0xc0] sm:$0xff]
    %v442 = vld [vmem:[#allocation5 + $0xc8] sm:$0xff]
    %v443 = vld [vmem:[#allocation5 + $0xd0] sm:$0xff]
    %v444 = vld [vmem:[#allocation5 + $0xd8] sm:$0xff]
    %v445 = vld [vmem:[#allocation5 + $0xe0] sm:$0xff]
    %v446 = vld [vmem:[#allocation5 + $0xe8] sm:$0xff]
    %v447 = vld [vmem:[#allocation5 + $0xf0] sm:$0xff]
    %v448 = vld [vmem:[#allocation5 + $0xf8] sm:$0xff]
    %v449 = vld [vmem:[%s9] sm:$0xf]
    %v451 = vlaneseq
    %v452 = vshrl.u32 %v451, 7
    %v453 = vsub.s32 0, %v452
    %v454 = vrot.slane %v449, %v453
    %v455 = vlaneseq
    %v456 = vshrl.u32 %v455, 7
    %v457 = vsub.s32 1, %v456
    %v458 = vrot.slane %v449, %v457
    %v459 = vlaneseq
    %v460 = vshrl.u32 %v459, 7
    %v461 = vsub.s32 2, %v460
    %v462 = vrot.slane %v449, %v461
    %v463 = vlaneseq
    %v464 = vshrl.u32 %v463, 7
    %v465 = vsub.s32 3, %v464
    %v466 = vrot.slane %v449, %v465
    %v503 = vunpack.c.l.b16 %v417
    %v504 = vunpack.c.h.b16 %v417
    %v505 = vunpack.c.l.b16 %v418
    %v506 = vunpack.c.h.b16 %v418
    %v507 = vunpack.c.l.b16 %v419
    %v508 = vunpack.c.h.b16 %v419
    %v509 = vunpack.c.l.b16 %v420
    %v510 = vunpack.c.h.b16 %v420
    %v511 = vunpack.c.l.b16 %v421
    %v512 = vunpack.c.h.b16 %v421
    %v513 = vunpack.c.l.b16 %v422
    %v514 = vunpack.c.h.b16 %v422
    %v515 = vunpack.c.l.b16 %v423
    %v516 = vunpack.c.h.b16 %v423
    %v517 = vunpack.c.l.b16 %v424
    %v518 = vunpack.c.h.b16 %v424
    %v519 = vunpack.c.l.b16 %v425
    %v520 = vunpack.c.h.b16 %v425
    %v521 = vunpack.c.l.b16 %v426
    %v522 = vunpack.c.h.b16 %v426
    %v523 = vunpack.c.l.b16 %v427
    %v524 = vunpack.c.h.b16 %v427
    %v525 = vunpack.c.l.b16 %v428
    %v526 = vunpack.c.h.b16 %v428
    %v527 = vunpack.c.l.b16 %v429
    %v528 = vunpack.c.h.b16 %v429
    %v529 = vunpack.c.l.b16 %v430
    %v530 = vunpack.c.h.b16 %v430
    %v531 = vunpack.c.l.b16 %v431
    %v532 = vunpack.c.h.b16 %v431
    %v533 = vunpack.c.l.b16 %v432
    %v534 = vunpack.c.h.b16 %v432
    %v535 = vunpack.c.l.b16 %v433
    %v536 = vunpack.c.h.b16 %v433
    %v537 = vunpack.c.l.b16 %v434
    %v538 = vunpack.c.h.b16 %v434
    %v539 = vunpack.c.l.b16 %v435
    %v540 = vunpack.c.h.b16 %v435
    %v541 = vunpack.c.l.b16 %v436
    %v542 = vunpack.c.h.b16 %v436
    %v543 = vunpack.c.l.b16 %v437
    %v544 = vunpack.c.h.b16 %v437
    %v545 = vunpack.c.l.b16 %v438
    %v546 = vunpack.c.h.b16 %v438
    %v547 = vunpack.c.l.b16 %v439
    %v548 = vunpack.c.h.b16 %v439
    %v549 = vunpack.c.l.b16 %v440
    %v550 = vunpack.c.h.b16 %v440
    %v551 = vunpack.c.l.b16 %v441
    %v552 = vunpack.c.h.b16 %v441
    %v553 = vunpack.c.l.b16 %v442
    %v554 = vunpack.c.h.b16 %v442
    %v555 = vunpack.c.l.b16 %v443
    %v556 = vunpack.c.h.b16 %v443
    %v557 = vunpack.c.l.b16 %v444
    %v558 = vunpack.c.h.b16 %v444
    %v559 = vunpack.c.l.b16 %v445
    %v560 = vunpack.c.h.b16 %v445
    %v561 = vunpack.c.l.b16 %v446
    %v562 = vunpack.c.h.b16 %v446
    %v563 = vunpack.c.l.b16 %v447
    %v564 = vunpack.c.h.b16 %v447
    %v565 = vunpack.c.l.b16 %v448
    %v566 = vunpack.c.h.b16 %v448
    %v567 = vpack.c.b16 %v507, %v503
    %v568 = vpack.c.b16 %v508, %v504
    %v569 = vpack.c.b16 %v509, %v505
    %v570 = vpack.c.b16 %v510, %v506
    %v571 = vpack.c.b16 %v515, %v511
    %v572 = vpack.c.b16 %v516, %v512
    %v573 = vpack.c.b16 %v517, %v513
    %v574 = vpack.c.b16 %v518, %v514
    %v575 = vpack.c.b16 %v523, %v519
    %v576 = vpack.c.b16 %v524, %v520
    %v577 = vpack.c.b16 %v525, %v521
    %v578 = vpack.c.b16 %v526, %v522
    %v579 = vpack.c.b16 %v531, %v527
    %v580 = vpack.c.b16 %v532, %v528
    %v581 = vpack.c.b16 %v533, %v529
    %v582 = vpack.c.b16 %v534, %v530
    %v583 = vpack.c.b16 %v539, %v535
    %v584 = vpack.c.b16 %v540, %v536
    %v585 = vpack.c.b16 %v541, %v537
    %v586 = vpack.c.b16 %v542, %v538
    %v587 = vpack.c.b16 %v547, %v543
    %v588 = vpack.c.b16 %v548, %v544
    %v589 = vpack.c.b16 %v549, %v545
    %v590 = vpack.c.b16 %v550, %v546
    %v591 = vpack.c.b16 %v555, %v551
    %v592 = vpack.c.b16 %v556, %v552
    %v593 = vpack.c.b16 %v557, %v553
    %v594 = vpack.c.b16 %v558, %v554
    %v595 = vpack.c.b16 %v563, %v559
    %v596 = vpack.c.b16 %v564, %v560
    %v597 = vpack.c.b16 %v565, %v561
    %v598 = vpack.c.b16 %v566, %v562
    %631 = vmatprep.subr.bf16.mxu0 %v568
    %632 = vmatpush1.bf16.msra.mxu0 %v567
    %633 = vmatprep.subr.bf16.mxu0 %v572
    %634 = vmatpush1.bf16.msra.mxu0 %v571
    %635 = vmatprep.subr.bf16.mxu0 %v576
    %636 = vmatpush1.bf16.msra.mxu0 %v575
    %637 = vmatprep.subr.bf16.mxu0 %v580
    %638 = vmatpush1.bf16.msra.mxu0 %v579
    %639 = vmatprep.subr.bf16.mxu0 %v584
    %640 = vmatpush1.bf16.msra.mxu0 %v583
    %641 = vmatprep.subr.bf16.mxu0 %v588
    %642 = vmatpush1.bf16.msra.mxu0 %v587
    %643 = vmatprep.subr.bf16.mxu0 %v592
    %644 = vmatpush1.bf16.msra.mxu0 %v591
    %645 = vmatprep.subr.bf16.mxu0 %v596
    %646 = vmatpush1.bf16.msra.mxu0 %v595
    %647 = vmatprep.subr.bf16.mxu0 0
    %648 = vmatpush1.bf16.msra.mxu0 0
    %649 = vmatprep.subr.bf16.mxu0 0
    %650 = vmatpush1.bf16.msra.mxu0 0
    %651 = vmatprep.subr.bf16.mxu0 0
    %652 = vmatpush1.bf16.msra.mxu0 0
    %653 = vmatprep.subr.bf16.mxu0 0
    %654 = vmatpush1.bf16.msra.mxu0 0
    %655 = vmatprep.subr.bf16.mxu0 0
    %656 = vmatpush1.bf16.msra.mxu0 0
    %657 = vmatprep.subr.bf16.mxu0 0
    %658 = vmatpush1.bf16.msra.mxu0 0
    %659 = vmatprep.subr.bf16.mxu0 0
    %660 = vmatpush1.bf16.msra.mxu0 0
    %661 = vmatprep.subr.bf16.mxu0 0
    %662 = vmatpush1.bf16.msra.mxu0 0
    %663 = vmatprep.mubr.bf16.mxu0 0
    %664 = vmatmul.mubr.bf16.gmra.mrb[0].mxu0 %v413
    %v665 = vpop.f32.mrb[0].mxu0
    %v666 = vadd.f32 %v454, %v665
    %v667 = vpop.f32.mrb[0].mxu0
    %v668 = vadd.f32 %v458, %v667
    %v669 = vpop.f32.mrb[0].mxu0
    %v670 = vadd.f32 %v454, %v669
    %v671 = vpop.f32.mrb[0].mxu0
    %v672 = vadd.f32 %v458, %v671
    %673 = vmatprep.mubr.bf16.mxu0 0
    %674 = vmatmul.mubr.bf16.gmra.mrb[0].mxu0 %v414
    %v675 = vpop.f32.mrb[0].mxu0
    %v676 = vadd.f32 %v454, %v675
    %v677 = vpop.f32.mrb[0].mxu0
    %v678 = vadd.f32 %v458, %v677
    %v679 = vpop.f32.mrb[0].mxu0
    %v680 = vadd.f32 %v454, %v679
    %v681 = vpop.f32.mrb[0].mxu0
    %v682 = vadd.f32 %v458, %v681
    %683 = vmatprep.mubr.bf16.mxu0 0
    %684 = vmatmul.mubr.bf16.gmra.mrb[0].mxu0 %v415
    %v685 = vpop.f32.mrb[0].mxu0
    %v686 = vadd.f32 %v454, %v685
    %v687 = vpop.f32.mrb[0].mxu0
    %v688 = vadd.f32 %v458, %v687
    %v689 = vpop.f32.mrb[0].mxu0
    %v690 = vadd.f32 %v454, %v689
    %v691 = vpop.f32.mrb[0].mxu0
    %v692 = vadd.f32 %v458, %v691
    %693 = vmatprep.mubr.bf16.mxu0 0
    %694 = vmatmul.mubr.bf16.gmra.mrb[0].mxu0 %v416
    %v695 = vpop.f32.mrb[0].mxu0
    %v696 = vadd.f32 %v454, %v695
    %v697 = vpop.f32.mrb[0].mxu0
    %v698 = vadd.f32 %v458, %v697
    %v699 = vpop.f32.mrb[0].mxu0
    %v700 = vadd.f32 %v454, %v699
    %v701 = vpop.f32.mrb[0].mxu0
    %v702 = vadd.f32 %v458, %v701
    %703 = vdwg.mxu0
    %704 = vmatprep.subr.bf16.mxu0 %v570
    %705 = vmatpush1.bf16.msra.mxu0 %v569
    %706 = vmatprep.subr.bf16.mxu0 %v574
    %707 = vmatpush1.bf16.msra.mxu0 %v573
    %708 = vmatprep.subr.bf16.mxu0 %v578
    %709 = vmatpush1.bf16.msra.mxu0 %v577
    %710 = vmatprep.subr.bf16.mxu0 %v582
    %711 = vmatpush1.bf16.msra.mxu0 %v581
    %712 = vmatprep.subr.bf16.mxu0 %v586
    %713 = vmatpush1.bf16.msra.mxu0 %v585
    %714 = vmatprep.subr.bf16.mxu0 %v590
    %715 = vmatpush1.bf16.msra.mxu0 %v589
    %716 = vmatprep.subr.bf16.mxu0 %v594
    %717 = vmatpush1.bf16.msra.mxu0 %v593
    %718 = vmatprep.subr.bf16.mxu0 %v598
    %719 = vmatpush1.bf16.msra.mxu0 %v597
    %720 = vmatprep.subr.bf16.mxu0 0
    %721 = vmatpush1.bf16.msra.mxu0 0
    %722 = vmatprep.subr.bf16.mxu0 0
    %723 = vmatpush1.bf16.msra.mxu0 0
    %724 = vmatprep.subr.bf16.mxu0 0
    %725 = vmatpush1.bf16.msra.mxu0 0
    %726 = vmatprep.subr.bf16.mxu0 0
    %727 = vmatpush1.bf16.msra.mxu0 0
    %728 = vmatprep.subr.bf16.mxu0 0
    %729 = vmatpush1.bf16.msra.mxu0 0
    %730 = vmatprep.subr.bf16.mxu0 0
    %731 = vmatpush1.bf16.msra.mxu0 0
    %732 = vmatprep.subr.bf16.mxu0 0
    %733 = vmatpush1.bf16.msra.mxu0 0
    %734 = vmatprep.subr.bf16.mxu0 0
    %735 = vmatpush1.bf16.msra.mxu0 0
    %736 = vmatprep.mubr.bf16.mxu0 0
    %737 = vmatmul.mubr.bf16.gmra.mrb[0].mxu0 %v413
    %v738 = vpop.f32.mrb[0].mxu0
    %v739 = vadd.f32 %v462, %v738
    %v740 = vpop.f32.mrb[0].mxu0
    %v741 = vadd.f32 %v466, %v740
    %v742 = vpop.f32.mrb[0].mxu0
    %v743 = vadd.f32 %v462, %v742
    %v744 = vpop.f32.mrb[0].mxu0
    %v745 = vadd.f32 %v466, %v744
    %746 = vmatprep.mubr.bf16.mxu0 0
    %747 = vmatmul.mubr.bf16.gmra.mrb[0].mxu0 %v414
    %v748 = vpop.f32.mrb[0].mxu0
    %v749 = vadd.f32 %v462, %v748
    %v750 = vpop.f32.mrb[0].mxu0
    %v751 = vadd.f32 %v466, %v750
    %v752 = vpop.f32.mrb[0].mxu0
    %v753 = vadd.f32 %v462, %v752
    %v754 = vpop.f32.mrb[0].mxu0
    %v755 = vadd.f32 %v466, %v754
    %756 = vmatprep.mubr.bf16.mxu0 0
    %757 = vmatmul.mubr.bf16.gmra.mrb[0].mxu0 %v415
    %v758 = vpop.f32.mrb[0].mxu0
    %v759 = vadd.f32 %v462, %v758
    %v760 = vpop.f32.mrb[0].mxu0
    %v761 = vadd.f32 %v466, %v760
    %v762 = vpop.f32.mrb[0].mxu0
    %v763 = vadd.f32 %v462, %v762
    %v764 = vpop.f32.mrb[0].mxu0
    %v765 = vadd.f32 %v466, %v764
    %766 = vmatprep.mubr.bf16.mxu0 0
    %767 = vmatmul.mubr.bf16.gmra.mrb[0].mxu0 %v416
    %v768 = vpop.f32.mrb[0].mxu0
    %v769 = vadd.f32 %v462, %v768
    %v770 = vpop.f32.mrb[0].mxu0
    %v771 = vadd.f32 %v466, %v770
    %v772 = vpop.f32.mrb[0].mxu0
    %v773 = vadd.f32 %v462, %v772
    %v774 = vpop.f32.mrb[0].mxu0
    %v775 = vadd.f32 %v466, %v774
    %776 = vdwg.mxu0
    %777 = vst [vmem:[#allocation2] sm:$0xff] %v666
    %778 = vst [vmem:[#allocation2 + $0x8] sm:$0xff] %v668
    %779 = vst [vmem:[#allocation2 + $0x10] sm:$0xff] %v739
    %780 = vst [vmem:[#allocation2 + $0x18] sm:$0xff] %v741
    %781 = vst [vmem:[#allocation2 + $0x20] sm:$0xff] %v670
    %782 = vst [vmem:[#allocation2 + $0x28] sm:$0xff] %v672
    %783 = vst [vmem:[#allocation2 + $0x30] sm:$0xff] %v743
    %784 = vst [vmem:[#allocation2 + $0x38] sm:$0xff] %v745
    %785 = vst [vmem:[#allocation2 + $0x40] sm:$0xff] %v676
    %786 = vst [vmem:[#allocation2 + $0x48] sm:$0xff] %v678
    %787 = vst [vmem:[#allocation2 + $0x50] sm:$0xff] %v749
    %788 = vst [vmem:[#allocation2 + $0x58] sm:$0xff] %v751
    %789 = vst [vmem:[#allocation2 + $0x60] sm:$0xff] %v680
    %790 = vst [vmem:[#allocation2 + $0x68] sm:$0xff] %v682
    %791 = vst [vmem:[#allocation2 + $0x70] sm:$0xff] %v753
    %792 = vst [vmem:[#allocation2 + $0x78] sm:$0xff] %v755
    %793 = vst [vmem:[#allocation2 + $0x80] sm:$0xff] %v686
    %794 = vst [vmem:[#allocation2 + $0x88] sm:$0xff] %v688
    %795 = vst [vmem:[#allocation2 + $0x90] sm:$0xff] %v759
    %796 = vst [vmem:[#allocation2 + $0x98] sm:$0xff] %v761
    %797 = vst [vmem:[#allocation2 + $0xa0] sm:$0xff] %v690
    %798 = vst [vmem:[#allocation2 + $0xa8] sm:$0xff] %v692
    %799 = vst [vmem:[#allocation2 + $0xb0] sm:$0xff] %v763
    %800 = vst [vmem:[#allocation2 + $0xb8] sm:$0xff] %v765
    %801 = vst [vmem:[#allocation2 + $0xc0] sm:$0xff] %v696
    %802 = vst [vmem:[#allocation2 + $0xc8] sm:$0xff] %v698
    %803 = vst [vmem:[#allocation2 + $0xd0] sm:$0xff] %v769
    %804 = vst [vmem:[#allocation2 + $0xd8] sm:$0xff] %v771
    %805 = vst [vmem:[#allocation2 + $0xe0] sm:$0xff] %v700
    %806 = vst [vmem:[#allocation2 + $0xe8] sm:$0xff] %v702
    %807 = vst [vmem:[#allocation2 + $0xf0] sm:$0xff] %v773
    %808 = vst [vmem:[#allocation2 + $0xf8] sm:$0xff] %v775
    %v809 = vld [vmem:[%s1] sm:$0xff]
    %v810 = vld [vmem:[%s2] sm:$0xff]
    %v811 = vld [vmem:[#allocation7] sm:$0xff]
    %v812 = vld [vmem:[#allocation7 + $0x8] sm:$0xff]
    %v813 = vld [vmem:[#allocation7 + $0x10] sm:$0xff]
    %v814 = vld [vmem:[#allocation7 + $0x18] sm:$0xff]
    %v815 = vld [vmem:[#allocation7 + $0x20] sm:$0xff]
    %v816 = vld [vmem:[#allocation7 + $0x28] sm:$0xff]
    %v817 = vld [vmem:[#allocation7 + $0x30] sm:$0xff]
    %v818 = vld [vmem:[#allocation7 + $0x38] sm:$0xff]
    %v819 = vld [vmem:[#allocation7 + $0x40] sm:$0xff]
    %v820 = vld [vmem:[#allocation7 + $0x48] sm:$0xff]
    %v821 = vld [vmem:[#allocation7 + $0x50] sm:$0xff]
    %v822 = vld [vmem:[#allocation7 + $0x58] sm:$0xff]
    %v823 = vld [vmem:[#allocation7 + $0x60] sm:$0xff]
    %v824 = vld [vmem:[#allocation7 + $0x68] sm:$0xff]
    %v825 = vld [vmem:[#allocation7 + $0x70] sm:$0xff]
    %v826 = vld [vmem:[#allocation7 + $0x78] sm:$0xff]
    %v827 = vld [vmem:[#allocation7 + $0x80] sm:$0xff]
    %v828 = vld [vmem:[#allocation7 + $0x88] sm:$0xff]
    %v829 = vld [vmem:[#allocation7 + $0x90] sm:$0xff]
    %v830 = vld [vmem:[#allocation7 + $0x98] sm:$0xff]
    %v831 = vld [vmem:[#allocation7 + $0xa0] sm:$0xff]
    %v832 = vld [vmem:[#allocation7 + $0xa8] sm:$0xff]
    %v833 = vld [vmem:[#allocation7 + $0xb0] sm:$0xff]
    %v834 = vld [vmem:[#allocation7 + $0xb8] sm:$0xff]
    %v835 = vld [vmem:[#allocation7 + $0xc0] sm:$0xff]
    %v836 = vld [vmem:[#allocation7 + $0xc8] sm:$0xff]
    %v837 = vld [vmem:[#allocation7 + $0xd0] sm:$0xff]
    %v838 = vld [vmem:[#allocation7 + $0xd8] sm:$0xff]
    %v839 = vld [vmem:[#allocation7 + $0xe0] sm:$0xff]
    %v840 = vld [vmem:[#allocation7 + $0xe8] sm:$0xff]
    %v841 = vld [vmem:[#allocation7 + $0xf0] sm:$0xff]
    %v842 = vld [vmem:[#allocation7 + $0xf8] sm:$0xff]
    %v843 = vld [vmem:[#allocation2] sm:$0xff]
    %v844 = vld [vmem:[#allocation2 + $0x8] sm:$0xff]
    %v845 = vld [vmem:[#allocation2 + $0x10] sm:$0xff]
    %v846 = vld [vmem:[#allocation2 + $0x18] sm:$0xff]
    %v847 = vpack.c.bf16 %v809, %v809
    %v880 = vunpack.c.l.b16 %v811
    %v881 = vunpack.c.h.b16 %v811
    %v882 = vunpack.c.l.b16 %v812
    %v883 = vunpack.c.h.b16 %v812
    %v884 = vunpack.c.l.b16 %v813
    %v885 = vunpack.c.h.b16 %v813
    %v886 = vunpack.c.l.b16 %v814
    %v887 = vunpack.c.h.b16 %v814
    %v888 = vunpack.c.l.b16 %v815
    %v889 = vunpack.c.h.b16 %v815
    %v890 = vunpack.c.l.b16 %v816
    %v891 = vunpack.c.h.b16 %v816
    %v892 = vunpack.c.l.b16 %v817
    %v893 = vunpack.c.h.b16 %v817
    %v894 = vunpack.c.l.b16 %v818
    %v895 = vunpack.c.h.b16 %v818
    %v896 = vunpack.c.l.b16 %v819
    %v897 = vunpack.c.h.b16 %v819
    %v898 = vunpack.c.l.b16 %v820
    %v899 = vunpack.c.h.b16 %v820
    %v900 = vunpack.c.l.b16 %v821
    %v901 = vunpack.c.h.b16 %v821
    %v902 = vunpack.c.l.b16 %v822
    %v903 = vunpack.c.h.b16 %v822
    %v904 = vunpack.c.l.b16 %v823
    %v905 = vunpack.c.h.b16 %v823
    %v906 = vunpack.c.l.b16 %v824
    %v907 = vunpack.c.h.b16 %v824
    %v908 = vunpack.c.l.b16 %v825
    %v909 = vunpack.c.h.b16 %v825
    %v910 = vunpack.c.l.b16 %v826
    %v911 = vunpack.c.h.b16 %v826
    %v912 = vunpack.c.l.b16 %v827
    %v913 = vunpack.c.h.b16 %v827
    %v914 = vunpack.c.l.b16 %v828
    %v915 = vunpack.c.h.b16 %v828
    %v916 = vunpack.c.l.b16 %v829
    %v917 = vunpack.c.h.b16 %v829
    %v918 = vunpack.c.l.b16 %v830
    %v919 = vunpack.c.h.b16 %v830
    %v920 = vunpack.c.l.b16 %v831
    %v921 = vunpack.c.h.b16 %v831
    %v922 = vunpack.c.l.b16 %v832
    %v923 = vunpack.c.h.b16 %v832
    %v924 = vunpack.c.l.b16 %v833
    %v925 = vunpack.c.h.b16 %v833
    %v926 = vunpack.c.l.b16 %v834
    %v927 = vunpack.c.h.b16 %v834
    %v928 = vunpack.c.l.b16 %v835
    %v929 = vunpack.c.h.b16 %v835
    %v930 = vunpack.c.l.b16 %v836
    %v931 = vunpack.c.h.b16 %v836
    %v932 = vunpack.c.l.b16 %v837
    %v933 = vunpack.c.h.b16 %v837
    %v934 = vunpack.c.l.b16 %v838
    %v935 = vunpack.c.h.b16 %v838
    %v936 = vunpack.c.l.b16 %v839
    %v937 = vunpack.c.h.b16 %v839
    %v938 = vunpack.c.l.b16 %v840
    %v939 = vunpack.c.h.b16 %v840
    %v940 = vunpack.c.l.b16 %v841
    %v941 = vunpack.c.h.b16 %v841
    %v942 = vunpack.c.l.b16 %v842
    %v943 = vunpack.c.h.b16 %v842
    %v944 = vpack.c.b16 %v884, %v880
    %v945 = vpack.c.b16 %v885, %v881
    %v946 = vpack.c.b16 %v886, %v882
    %v947 = vpack.c.b16 %v887, %v883
    %v948 = vpack.c.b16 %v892, %v888
    %v949 = vpack.c.b16 %v893, %v889
    %v950 = vpack.c.b16 %v894, %v890
    %v951 = vpack.c.b16 %v895, %v891
    %v952 = vpack.c.b16 %v900, %v896
    %v953 = vpack.c.b16 %v901, %v897
    %v954 = vpack.c.b16 %v902, %v898
    %v955 = vpack.c.b16 %v903, %v899
    %v956 = vpack.c.b16 %v908, %v904
    %v957 = vpack.c.b16 %v909, %v905
    %v958 = vpack.c.b16 %v910, %v906
    %v959 = vpack.c.b16 %v911, %v907
    %v960 = vpack.c.b16 %v916, %v912
    %v961 = vpack.c.b16 %v917, %v913
    %v962 = vpack.c.b16 %v918, %v914
    %v963 = vpack.c.b16 %v919, %v915
    %v964 = vpack.c.b16 %v924, %v920
    %v965 = vpack.c.b16 %v925, %v921
    %v966 = vpack.c.b16 %v926, %v922
    %v967 = vpack.c.b16 %v927, %v923
    %v968 = vpack.c.b16 %v932, %v928
    %v969 = vpack.c.b16 %v933, %v929
    %v970 = vpack.c.b16 %v934, %v930
    %v971 = vpack.c.b16 %v935, %v931
    %v972 = vpack.c.b16 %v940, %v936
    %v973 = vpack.c.b16 %v941, %v937
    %v974 = vpack.c.b16 %v942, %v938
    %v975 = vpack.c.b16 %v943, %v939
    %1008 = vmatprep.subr.bf16.mxu0 %v945
    %1009 = vmatpush1.bf16.msra.mxu0 %v944
    %1010 = vmatprep.subr.bf16.mxu0 %v949
    %1011 = vmatpush1.bf16.msra.mxu0 %v948
    %1012 = vmatprep.subr.bf16.mxu0 %v953
    %1013 = vmatpush1.bf16.msra.mxu0 %v952
    %1014 = vmatprep.subr.bf16.mxu0 %v957
    %1015 = vmatpush1.bf16.msra.mxu0 %v956
    %1016 = vmatprep.subr.bf16.mxu0 %v961
    %1017 = vmatpush1.bf16.msra.mxu0 %v960
    %1018 = vmatprep.subr.bf16.mxu0 %v965
    %1019 = vmatpush1.bf16.msra.mxu0 %v964
    %1020 = vmatprep.subr.bf16.mxu0 %v969
    %1021 = vmatpush1.bf16.msra.mxu0 %v968
    %1022 = vmatprep.subr.bf16.mxu0 %v973
    %1023 = vmatpush1.bf16.msra.mxu0 %v972
    %1024 = vmatprep.subr.bf16.mxu0 0
    %1025 = vmatpush1.bf16.msra.mxu0 0
    %1026 = vmatprep.subr.bf16.mxu0 0
    %1027 = vmatpush1.bf16.msra.mxu0 0
    %1028 = vmatprep.subr.bf16.mxu0 0
    %1029 = vmatpush1.bf16.msra.mxu0 0
    %1030 = vmatprep.subr.bf16.mxu0 0
    %1031 = vmatpush1.bf16.msra.mxu0 0
    %1032 = vmatprep.subr.bf16.mxu0 0
    %1033 = vmatpush1.bf16.msra.mxu0 0
    %1034 = vmatprep.subr.bf16.mxu0 0
    %1035 = vmatpush1.bf16.msra.mxu0 0
    %1036 = vmatprep.subr.bf16.mxu0 0
    %1037 = vmatpush1.bf16.msra.mxu0 0
    %1038 = vmatprep.subr.bf16.mxu0 0
    %1039 = vmatpush1.bf16.msra.mxu0 0
    %1040 = vmatprep.mubr.bf16.mxu0 0
    %1041 = vmatmul.mubr.bf16.gmra.mrb[0].mxu0 %v847
    %v1042 = vpop.f32.mrb[0].mxu0
    %v1043 = vadd.f32 0.0, %v1042
    %v1044 = vpop.f32.mrb[0].mxu0
    %v1045 = vadd.f32 0.0, %v1044
    %v1046 = vpop.f32.mrb[0].mxu0
    %v1047 = vpop.f32.mrb[0].mxu0
    %1048 = vdwg.mxu0
    %1049 = vmatprep.subr.bf16.mxu0 %v947
    %1050 = vmatpush1.bf16.msra.mxu0 %v946
    %1051 = vmatprep.subr.bf16.mxu0 %v951
    %1052 = vmatpush1.bf16.msra.mxu0 %v950
    %1053 = vmatprep.subr.bf16.mxu0 %v955
    %1054 = vmatpush1.bf16.msra.mxu0 %v954
    %1055 = vmatprep.subr.bf16.mxu0 %v959
    %1056 = vmatpush1.bf16.msra.mxu0 %v958
    %1057 = vmatprep.subr.bf16.mxu0 %v963
    %1058 = vmatpush1.bf16.msra.mxu0 %v962
    %1059 = vmatprep.subr.bf16.mxu0 %v967
    %1060 = vmatpush1.bf16.msra.mxu0 %v966
    %1061 = vmatprep.subr.bf16.mxu0 %v971
    %1062 = vmatpush1.bf16.msra.mxu0 %v970
    %1063 = vmatprep.subr.bf16.mxu0 %v975
    %1064 = vmatpush1.bf16.msra.mxu0 %v974
    %1065 = vmatprep.subr.bf16.mxu0 0
    %1066 = vmatpush1.bf16.msra.mxu0 0
    %1067 = vmatprep.subr.bf16.mxu0 0
    %1068 = vmatpush1.bf16.msra.mxu0 0
    %1069 = vmatprep.subr.bf16.mxu0 0
    %1070 = vmatpush1.bf16.msra.mxu0 0
    %1071 = vmatprep.subr.bf16.mxu0 0
    %1072 = vmatpush1.bf16.msra.mxu0 0
    %1073 = vmatprep.subr.bf16.mxu0 0
    %1074 = vmatpush1.bf16.msra.mxu0 0
    %1075 = vmatprep.subr.bf16.mxu0 0
    %1076 = vmatpush1.bf16.msra.mxu0 0
    %1077 = vmatprep.subr.bf16.mxu0 0
    %1078 = vmatpush1.bf16.msra.mxu0 0
    %1079 = vmatprep.subr.bf16.mxu0 0
    %1080 = vmatpush1.bf16.msra.mxu0 0
    %1081 = vmatprep.mubr.bf16.mxu0 0
    %1082 = vmatmul.mubr.bf16.gmra.mrb[0].mxu0 %v847
    %v1083 = vpop.f32.mrb[0].mxu0
    %v1084 = vadd.f32 0.0, %v1083
    %v1085 = vpop.f32.mrb[0].mxu0
    %v1086 = vadd.f32 0.0, %v1085
    %v1087 = vpop.f32.mrb[0].mxu0
    %v1088 = vpop.f32.mrb[0].mxu0
    %1089 = vdwg.mxu0
    %v1090 = vadd.f32 %v843, %v1043
    %v1091 = vadd.f32 %v844, %v1045
    %v1092 = vadd.f32 %v845, %v1084
    %v1093 = vadd.f32 %v846, %v1086
    %v1094 = vxor.u32 %v1090, 2147483648
    %v1095 = vmul.f32 %v1094, 1.442695
    %v1096 = vpow.pop %v1095
    %v1097 = vadd.f32 %v1096, 1.0
    %v1098 = vrcp.pop %v1097
    %v1099 = vmul.f32 1.0, %v1098
    %v1100 = vxor.u32 %v1091, 2147483648
    %v1101 = vmul.f32 %v1100, 1.442695
    %v1102 = vpow.pop %v1101
    %v1103 = vadd.f32 %v1102, 1.0
    %v1104 = vrcp.pop %v1103
    %v1105 = vmul.f32 1.0, %v1104
    %v1106 = vtanh.pop %v1092
    %v1107 = vxor.u32 %v1093, 2147483648
    %v1108 = vmul.f32 %v1107, 1.442695
    %v1109 = vpow.pop %v1108
    %v1110 = vadd.f32 %v1109, 1.0
    %v1111 = vrcp.pop %v1110
    %v1112 = vmul.f32 1.0, %v1111
    %v1113 = vmul.f32 %v1105, %v810
    %v1114 = vmul.f32 %v1099, %v1106
    %v1115 = vadd.f32 %v1113, %v1114
    %v1116 = vtanh.pop %v1115
    %v1117 = vmul.f32 %v1112, %v1116
    %s1118 = scalar_lea.vmem [#allocation2], 32
    %v1119 = vld [vmem:[%s1118] sm:$0xff]
    %v1120 = vld [vmem:[%s1118 + $0x8] sm:$0xff]
    %v1121 = vld [vmem:[%s1118 + $0x10] sm:$0xff]
    %v1122 = vld [vmem:[%s1118 + $0x18] sm:$0xff]
    %v1123 = vpack.c.bf16 %v1117, %v1117
    %1124 = vmatprep.subr.bf16.mxu0 %v945
    %1125 = vmatpush1.bf16.msra.mxu0 %v944
    %1126 = vmatprep.subr.bf16.mxu0 %v949
    %1127 = vmatpush1.bf16.msra.mxu0 %v948
    %1128 = vmatprep.subr.bf16.mxu0 %v953
    %1129 = vmatpush1.bf16.msra.mxu0 %v952
    %1130 = vmatprep.subr.bf16.mxu0 %v957
    %1131 = vmatpush1.bf16.msra.mxu0 %v956
    %1132 = vmatprep.subr.bf16.mxu0 %v961
    %1133 = vmatpush1.bf16.msra.mxu0 %v960
    %1134 = vmatprep.subr.bf16.mxu0 %v965
    %1135 = vmatpush1.bf16.msra.mxu0 %v964
    %1136 = vmatprep.subr.bf16.mxu0 %v969
    %1137 = vmatpush1.bf16.msra.mxu0 %v968
    %1138 = vmatprep.subr.bf16.mxu0 %v973
    %1139 = vmatpush1.bf16.msra.mxu0 %v972
    %1140 = vmatprep.subr.bf16.mxu0 0
    %1141 = vmatpush1.bf16.msra.mxu0 0
    %1142 = vmatprep.subr.bf16.mxu0 0
    %1143 = vmatpush1.bf16.msra.mxu0 0
    %1144 = vmatprep.subr.bf16.mxu0 0
    %1145 = vmatpush1.bf16.msra.mxu0 0
    %1146 = vmatprep.subr.bf16.mxu0 0
    %1147 = vmatpush1.bf16.msra.mxu0 0
    %1148 = vmatprep.subr.bf16.mxu0 0
    %1149 = vmatpush1.bf16.msra.mxu0 0
    %1150 = vmatprep.subr.bf16.mxu0 0
    %1151 = vmatpush1.bf16.msra.mxu0 0
    %1152 = vmatprep.subr.bf16.mxu0 0
    %1153 = vmatpush1.bf16.msra.mxu0 0
    %1154 = vmatprep.subr.bf16.mxu0 0
    %1155 = vmatpush1.bf16.msra.mxu0 0
    %1156 = vmatprep.mubr.bf16.mxu0 0
    %1157 = vmatmul.mubr.bf16.gmra.mrb[0].mxu0 %v1123
    %v1158 = vpop.f32.mrb[0].mxu0
    %v1159 = vadd.f32 0.0, %v1158
    %v1160 = vpop.f32.mrb[0].mxu0
    %v1161 = vadd.f32 0.0, %v1160
    %v1162 = vpop.f32.mrb[0].mxu0
    %v1163 = vpop.f32.mrb[0].mxu0
    %1164 = vdwg.mxu0
    %1165 = vmatprep.subr.bf16.mxu0 %v947
    %1166 = vmatpush1.bf16.msra.mxu0 %v946
    %1167 = vmatprep.subr.bf16.mxu0 %v951
    %1168 = vmatpush1.bf16.msra.mxu0 %v950
    %1169 = vmatprep.subr.bf16.mxu0 %v955
    %1170 = vmatpush1.bf16.msra.mxu0 %v954
    %1171 = vmatprep.subr.bf16.mxu0 %v959
    %1172 = vmatpush1.bf16.msra.mxu0 %v958
    %1173 = vmatprep.subr.bf16.mxu0 %v963
    %1174 = vmatpush1.bf16.msra.mxu0 %v962
    %1175 = vmatprep.subr.bf16.mxu0 %v967
    %1176 = vmatpush1.bf16.msra.mxu0 %v966
    %1177 = vmatprep.subr.bf16.mxu0 %v971
    %1178 = vmatpush1.bf16.msra.mxu0 %v970
    %1179 = vmatprep.subr.bf16.mxu0 %v975
    %1180 = vmatpush1.bf16.msra.mxu0 %v974
    %1181 = vmatprep.subr.bf16.mxu0 0
    %1182 = vmatpush1.bf16.msra.mxu0 0
    %1183 = vmatprep.subr.bf16.mxu0 0
    %1184 = vmatpush1.bf16.msra.mxu0 0
    %1185 = vmatprep.subr.bf16.mxu0 0
    %1186 = vmatpush1.bf16.msra.mxu0 0
    %1187 = vmatprep.subr.bf16.mxu0 0
    %1188 = vmatpush1.bf16.msra.mxu0 0
    %1189 = vmatprep.subr.bf16.mxu0 0
    %1190 = vmatpush1.bf16.msra.mxu0 0
    %1191 = vmatprep.subr.bf16.mxu0 0
    %1192 = vmatpush1.bf16.msra.mxu0 0
    %1193 = vmatprep.subr.bf16.mxu0 0
    %1194 = vmatpush1.bf16.msra.mxu0 0
    %1195 = vmatprep.subr.bf16.mxu0 0
    %1196 = vmatpush1.bf16.msra.mxu0 0
    %1197 = vmatprep.mubr.bf16.mxu0 0
    %1198 = vmatmul.mubr.bf16.gmra.mrb[0].mxu0 %v1123
    %v1199 = vpop.f32.mrb[0].mxu0
    %v1200 = vadd.f32 0.0, %v1199
    %v1201 = vpop.f32.mrb[0].mxu0
    %v1202 = vadd.f32 0.0, %v1201
    %v1203 = vpop.f32.mrb[0].mxu0
    %v1204 = vpop.f32.mrb[0].mxu0
    %1205 = vdwg.mxu0
    %v1206 = vadd.f32 %v1119, %v1159
    %v1207 = vadd.f32 %v1120, %v1161
    %v1208 = vadd.f32 %v1121, %v1200
    %v1209 = vadd.f32 %v1122, %v1202
    %v1210 = vxor.u32 %v1206, 2147483648
    %v1211 = vmul.f32 %v1210, 1.442695
    %v1212 = vpow.pop %v1211
    %v1213 = vadd.f32 %v1212, 1.0
    %v1214 = vrcp.pop %v1213
    %v1215 = vmul.f32 1.0, %v1214
    %v1216 = vxor.u32 %v1207, 2147483648
    %v1217 = vmul.f32 %v1216, 1.442695
    %v1218 = vpow.pop %v1217
    %v1219 = vadd.f32 %v1218, 1.0
    %v1220 = vrcp.pop %v1219
    %v1221 = vmul.f32 1.0, %v1220
    %v1222 = vtanh.pop %v1208
    %v1223 = vxor.u32 %v1209, 2147483648
    %v1224 = vmul.f32 %v1223, 1.442695
    %v1225 = vpow.pop %v1224
    %v1226 = vadd.f32 %v1225, 1.0
    %v1227 = vrcp.pop %v1226
    %v1228 = vmul.f32 1.0, %v1227
    %v1229 = vmul.f32 %v1221, %v1115
    %v1230 = vmul.f32 %v1215, %v1222
    %v1231 = vadd.f32 %v1229, %v1230
    %v1232 = vtanh.pop %v1231
    %v1233 = vmul.f32 %v1228, %v1232
    %s1234 = scalar_lea.vmem [#allocation2], 64
    %v1235 = vld [vmem:[%s1234] sm:$0xff]
    %v1236 = vld [vmem:[%s1234 + $0x8] sm:$0xff]
    %v1237 = vld [vmem:[%s1234 + $0x10] sm:$0xff]
    %v1238 = vld [vmem:[%s1234 + $0x18] sm:$0xff]
    %v1239 = vpack.c.bf16 %v1233, %v1233
    %1240 = vmatprep.subr.bf16.mxu0 %v945
    %1241 = vmatpush1.bf16.msra.mxu0 %v944
    %1242 = vmatprep.subr.bf16.mxu0 %v949
    %1243 = vmatpush1.bf16.msra.mxu0 %v948
    %1244 = vmatprep.subr.bf16.mxu0 %v953
    %1245 = vmatpush1.bf16.msra.mxu0 %v952
    %1246 = vmatprep.subr.bf16.mxu0 %v957
    %1247 = vmatpush1.bf16.msra.mxu0 %v956
    %1248 = vmatprep.subr.bf16.mxu0 %v961
    %1249 = vmatpush1.bf16.msra.mxu0 %v960
    %1250 = vmatprep.subr.bf16.mxu0 %v965
    %1251 = vmatpush1.bf16.msra.mxu0 %v964
    %1252 = vmatprep.subr.bf16.mxu0 %v969
    %1253 = vmatpush1.bf16.msra.mxu0 %v968
    %1254 = vmatprep.subr.bf16.mxu0 %v973
    %1255 = vmatpush1.bf16.msra.mxu0 %v972
    %1256 = vmatprep.subr.bf16.mxu0 0
    %1257 = vmatpush1.bf16.msra.mxu0 0
    %1258 = vmatprep.subr.bf16.mxu0 0
    %1259 = vmatpush1.bf16.msra.mxu0 0
    %1260 = vmatprep.subr.bf16.mxu0 0
    %1261 = vmatpush1.bf16.msra.mxu0 0
    %1262 = vmatprep.subr.bf16.mxu0 0
    %1263 = vmatpush1.bf16.msra.mxu0 0
    %1264 = vmatprep.subr.bf16.mxu0 0
    %1265 = vmatpush1.bf16.msra.mxu0 0
    %1266 = vmatprep.subr.bf16.mxu0 0
    %1267 = vmatpush1.bf16.msra.mxu0 0
    %1268 = vmatprep.subr.bf16.mxu0 0
    %1269 = vmatpush1.bf16.msra.mxu0 0
    %1270 = vmatprep.subr.bf16.mxu0 0
    %1271 = vmatpush1.bf16.msra.mxu0 0
    %1272 = vmatprep.mubr.bf16.mxu0 0
    %1273 = vmatmul.mubr.bf16.gmra.mrb[0].mxu0 %v1239
    %v1274 = vpop.f32.mrb[0].mxu0
    %v1275 = vadd.f32 0.0, %v1274
    %v1276 = vpop.f32.mrb[0].mxu0
    %v1277 = vadd.f32 0.0, %v1276
    %v1278 = vpop.f32.mrb[0].mxu0
    %v1279 = vpop.f32.mrb[0].mxu0
    %1280 = vdwg.mxu0
    %1281 = vmatprep.subr.bf16.mxu0 %v947
    %1282 = vmatpush1.bf16.msra.mxu0 %v946
    %1283 = vmatprep.subr.bf16.mxu0 %v951
    %1284 = vmatpush1.bf16.msra.mxu0 %v950
    %1285 = vmatprep.subr.bf16.mxu0 %v955
    %1286 = vmatpush1.bf16.msra.mxu0 %v954
    %1287 = vmatprep.subr.bf16.mxu0 %v959
    %1288 = vmatpush1.bf16.msra.mxu0 %v958
    %1289 = vmatprep.subr.bf16.mxu0 %v963
    %1290 = vmatpush1.bf16.msra.mxu0 %v962
    %1291 = vmatprep.subr.bf16.mxu0 %v967
    %1292 = vmatpush1.bf16.msra.mxu0 %v966
    %1293 = vmatprep.subr.bf16.mxu0 %v971
    %1294 = vmatpush1.bf16.msra.mxu0 %v970
    %1295 = vmatprep.subr.bf16.mxu0 %v975
    %1296 = vmatpush1.bf16.msra.mxu0 %v974
    %1297 = vmatprep.subr.bf16.mxu0 0
    %1298 = vmatpush1.bf16.msra.mxu0 0
    %1299 = vmatprep.subr.bf16.mxu0 0
    %1300 = vmatpush1.bf16.msra.mxu0 0
    %1301 = vmatprep.subr.bf16.mxu0 0
    %1302 = vmatpush1.bf16.msra.mxu0 0
    %1303 = vmatprep.subr.bf16.mxu0 0
    %1304 = vmatpush1.bf16.msra.mxu0 0
    %1305 = vmatprep.subr.bf16.mxu0 0
    %1306 = vmatpush1.bf16.msra.mxu0 0
    %1307 = vmatprep.subr.bf16.mxu0 0
    %1308 = vmatpush1.bf16.msra.mxu0 0
    %1309 = vmatprep.subr.bf16.mxu0 0
    %1310 = vmatpush1.bf16.msra.mxu0 0
    %1311 = vmatprep.subr.bf16.mxu0 0
    %1312 = vmatpush1.bf16.msra.mxu0 0
    %1313 = vmatprep.mubr.bf16.mxu0 0
    %1314 = vmatmul.mubr.bf16.gmra.mrb[0].mxu0 %v1239
    %v1315 = vpop.f32.mrb[0].mxu0
    %v1316 = vadd.f32 0.0, %v1315
    %v1317 = vpop.f32.mrb[0].mxu0
    %v1318 = vadd.f32 0.0, %v1317
    %v1319 = vpop.f32.mrb[0].mxu0
    %v1320 = vpop.f32.mrb[0].mxu0
    %1321 = vdwg.mxu0
    %v1322 = vadd.f32 %v1235, %v1275
    %v1323 = vadd.f32 %v1236, %v1277
    %v1324 = vadd.f32 %v1237, %v1316
    %v1325 = vadd.f32 %v1238, %v1318
    %v1326 = vxor.u32 %v1322, 2147483648
    %v1327 = vmul.f32 %v1326, 1.442695
    %v1328 = vpow.pop %v1327
    %v1329 = vadd.f32 %v1328, 1.0
    %v1330 = vrcp.pop %v1329
    %v1331 = vmul.f32 1.0, %v1330
    %v1332 = vxor.u32 %v1323, 2147483648
    %v1333 = vmul.f32 %v1332, 1.442695
    %v1334 = vpow.pop %v1333
    %v1335 = vadd.f32 %v1334, 1.0
    %v1336 = vrcp.pop %v1335
    %v1337 = vmul.f32 1.0, %v1336
    %v1338 = vtanh.pop %v1324
    %v1339 = vxor.u32 %v1325, 2147483648
    %v1340 = vmul.f32 %v1339, 1.442695
    %v1341 = vpow.pop %v1340
    %v1342 = vadd.f32 %v1341, 1.0
    %v1343 = vrcp.pop %v1342
    %v1344 = vmul.f32 1.0, %v1343
    %v1345 = vmul.f32 %v1337, %v1231
    %v1346 = vmul.f32 %v1331, %v1338
    %v1347 = vadd.f32 %v1345, %v1346
    %v1348 = vtanh.pop %v1347
    %v1349 = vmul.f32 %v1344, %v1348
    %s1350 = scalar_lea.vmem [#allocation2], 96
    %v1351 = vld [vmem:[%s1350] sm:$0xff]
    %v1352 = vld [vmem:[%s1350 + $0x8] sm:$0xff]
    %v1353 = vld [vmem:[%s1350 + $0x10] sm:$0xff]
    %v1354 = vld [vmem:[%s1350 + $0x18] sm:$0xff]
    %v1355 = vpack.c.bf16 %v1349, %v1349
    %1356 = vmatprep.subr.bf16.mxu0 %v945
    %1357 = vmatpush1.bf16.msra.mxu0 %v944
    %1358 = vmatprep.subr.bf16.mxu0 %v949
    %1359 = vmatpush1.bf16.msra.mxu0 %v948
    %1360 = vmatprep.subr.bf16.mxu0 %v953
    %1361 = vmatpush1.bf16.msra.mxu0 %v952
    %1362 = vmatprep.subr.bf16.mxu0 %v957
    %1363 = vmatpush1.bf16.msra.mxu0 %v956
    %1364 = vmatprep.subr.bf16.mxu0 %v961
    %1365 = vmatpush1.bf16.msra.mxu0 %v960
    %1366 = vmatprep.subr.bf16.mxu0 %v965
    %1367 = vmatpush1.bf16.msra.mxu0 %v964
    %1368 = vmatprep.subr.bf16.mxu0 %v969
    %1369 = vmatpush1.bf16.msra.mxu0 %v968
    %1370 = vmatprep.subr.bf16.mxu0 %v973
    %1371 = vmatpush1.bf16.msra.mxu0 %v972
    %1372 = vmatprep.subr.bf16.mxu0 0
    %1373 = vmatpush1.bf16.msra.mxu0 0
    %1374 = vmatprep.subr.bf16.mxu0 0
    %1375 = vmatpush1.bf16.msra.mxu0 0
    %1376 = vmatprep.subr.bf16.mxu0 0
    %1377 = vmatpush1.bf16.msra.mxu0 0
    %1378 = vmatprep.subr.bf16.mxu0 0
    %1379 = vmatpush1.bf16.msra.mxu0 0
    %1380 = vmatprep.subr.bf16.mxu0 0
    %1381 = vmatpush1.bf16.msra.mxu0 0
    %1382 = vmatprep.subr.bf16.mxu0 0
    %1383 = vmatpush1.bf16.msra.mxu0 0
    %1384 = vmatprep.subr.bf16.mxu0 0
    %1385 = vmatpush1.bf16.msra.mxu0 0
    %1386 = vmatprep.subr.bf16.mxu0 0
    %1387 = vmatpush1.bf16.msra.mxu0 0
    %1388 = vmatprep.mubr.bf16.mxu0 0
    %1389 = vmatmul.mubr.bf16.gmra.mrb[0].mxu0 %v1355
    %v1390 = vpop.f32.mrb[0].mxu0
    %v1391 = vadd.f32 0.0, %v1390
    %v1392 = vpop.f32.mrb[0].mxu0
    %v1393 = vadd.f32 0.0, %v1392
    %v1394 = vpop.f32.mrb[0].mxu0
    %v1395 = vpop.f32.mrb[0].mxu0
    %1396 = vdwg.mxu0
    %1397 = vmatprep.subr.bf16.mxu0 %v947
    %1398 = vmatpush1.bf16.msra.mxu0 %v946
    %1399 = vmatprep.subr.bf16.mxu0 %v951
    %1400 = vmatpush1.bf16.msra.mxu0 %v950
    %1401 = vmatprep.subr.bf16.mxu0 %v955
    %1402 = vmatpush1.bf16.msra.mxu0 %v954
    %1403 = vmatprep.subr.bf16.mxu0 %v959
    %1404 = vmatpush1.bf16.msra.mxu0 %v958
    %1405 = vmatprep.subr.bf16.mxu0 %v963
    %1406 = vmatpush1.bf16.msra.mxu0 %v962
    %1407 = vmatprep.subr.bf16.mxu0 %v967
    %1408 = vmatpush1.bf16.msra.mxu0 %v966
    %1409 = vmatprep.subr.bf16.mxu0 %v971
    %1410 = vmatpush1.bf16.msra.mxu0 %v970
    %1411 = vmatprep.subr.bf16.mxu0 %v975
    %1412 = vmatpush1.bf16.msra.mxu0 %v974
    %1413 = vmatprep.subr.bf16.mxu0 0
    %1414 = vmatpush1.bf16.msra.mxu0 0
    %1415 = vmatprep.subr.bf16.mxu0 0
    %1416 = vmatpush1.bf16.msra.mxu0 0
    %1417 = vmatprep.subr.bf16.mxu0 0
    %1418 = vmatpush1.bf16.msra.mxu0 0
    %1419 = vmatprep.subr.bf16.mxu0 0
    %1420 = vmatpush1.bf16.msra.mxu0 0
    %1421 = vmatprep.subr.bf16.mxu0 0
    %1422 = vmatpush1.bf16.msra.mxu0 0
    %1423 = vmatprep.subr.bf16.mxu0 0
    %1424 = vmatpush1.bf16.msra.mxu0 0
    %1425 = vmatprep.subr.bf16.mxu0 0
    %1426 = vmatpush1.bf16.msra.mxu0 0
    %1427 = vmatprep.subr.bf16.mxu0 0
    %1428 = vmatpush1.bf16.msra.mxu0 0
    %1429 = vmatprep.mubr.bf16.mxu0 0
    %1430 = vmatmul.mubr.bf16.gmra.mrb[0].mxu0 %v1355
    %v1431 = vpop.f32.mrb[0].mxu0
    %v1432 = vadd.f32 0.0, %v1431
    %v1433 = vpop.f32.mrb[0].mxu0
    %v1434 = vadd.f32 0.0, %v1433
    %v1435 = vpop.f32.mrb[0].mxu0
    %v1436 = vpop.f32.mrb[0].mxu0
    %1437 = vdwg.mxu0
    %v1438 = vadd.f32 %v1351, %v1391
    %v1439 = vadd.f32 %v1352, %v1393
    %v1440 = vadd.f32 %v1353, %v1432
    %v1441 = vadd.f32 %v1354, %v1434
    %v1442 = vxor.u32 %v1438, 2147483648
    %v1443 = vmul.f32 %v1442, 1.442695
    %v1444 = vpow.pop %v1443
    %v1445 = vadd.f32 %v1444, 1.0
    %v1446 = vrcp.pop %v1445
    %v1447 = vmul.f32 1.0, %v1446
    %v1448 = vxor.u32 %v1439, 2147483648
    %v1449 = vmul.f32 %v1448, 1.442695
    %v1450 = vpow.pop %v1449
    %v1451 = vadd.f32 %v1450, 1.0
    %v1452 = vrcp.pop %v1451
    %v1453 = vmul.f32 1.0, %v1452
    %v1454 = vtanh.pop %v1440
    %v1455 = vxor.u32 %v1441, 2147483648
    %v1456 = vmul.f32 %v1455, 1.442695
    %v1457 = vpow.pop %v1456
    %v1458 = vadd.f32 %v1457, 1.0
    %v1459 = vrcp.pop %v1458
    %v1460 = vmul.f32 1.0, %v1459
    %v1461 = vmul.f32 %v1453, %v1347
    %v1462 = vmul.f32 %v1447, %v1454
    %v1463 = vadd.f32 %v1461, %v1462
    %v1464 = vtanh.pop %v1463
    %v1465 = vmul.f32 %v1460, %v1464
    %s1466 = scalar_lea.vmem [#allocation2], 128
    %v1467 = vld [vmem:[%s1466] sm:$0xff]
    %v1468 = vld [vmem:[%s1466 + $0x8] sm:$0xff]
    %v1469 = vld [vmem:[%s1466 + $0x10] sm:$0xff]
    %v1470 = vld [vmem:[%s1466 + $0x18] sm:$0xff]
    %v1471 = vpack.c.bf16 %v1465, %v1465
    %1472 = vmatprep.subr.bf16.mxu0 %v945
    %1473 = vmatpush1.bf16.msra.mxu0 %v944
    %1474 = vmatprep.subr.bf16.mxu0 %v949
    %1475 = vmatpush1.bf16.msra.mxu0 %v948
    %1476 = vmatprep.subr.bf16.mxu0 %v953
    %1477 = vmatpush1.bf16.msra.mxu0 %v952
    %1478 = vmatprep.subr.bf16.mxu0 %v957
    %1479 = vmatpush1.bf16.msra.mxu0 %v956
    %1480 = vmatprep.subr.bf16.mxu0 %v961
    %1481 = vmatpush1.bf16.msra.mxu0 %v960
    %1482 = vmatprep.subr.bf16.mxu0 %v965
    %1483 = vmatpush1.bf16.msra.mxu0 %v964
    %1484 = vmatprep.subr.bf16.mxu0 %v969
    %1485 = vmatpush1.bf16.msra.mxu0 %v968
    %1486 = vmatprep.subr.bf16.mxu0 %v973
    %1487 = vmatpush1.bf16.msra.mxu0 %v972
    %1488 = vmatprep.subr.bf16.mxu0 0
    %1489 = vmatpush1.bf16.msra.mxu0 0
    %1490 = vmatprep.subr.bf16.mxu0 0
    %1491 = vmatpush1.bf16.msra.mxu0 0
    %1492 = vmatprep.subr.bf16.mxu0 0
    %1493 = vmatpush1.bf16.msra.mxu0 0
    %1494 = vmatprep.subr.bf16.mxu0 0
    %1495 = vmatpush1.bf16.msra.mxu0 0
    %1496 = vmatprep.subr.bf16.mxu0 0
    %1497 = vmatpush1.bf16.msra.mxu0 0
    %1498 = vmatprep.subr.bf16.mxu0 0
    %1499 = vmatpush1.bf16.msra.mxu0 0
    %1500 = vmatprep.subr.bf16.mxu0 0
    %1501 = vmatpush1.bf16.msra.mxu0 0
    %1502 = vmatprep.subr.bf16.mxu0 0
    %1503 = vmatpush1.bf16.msra.mxu0 0
    %1504 = vmatprep.mubr.bf16.mxu0 0
    %1505 = vmatmul.mubr.bf16.gmra.mrb[0].mxu0 %v1471
    %v1506 = vpop.f32.mrb[0].mxu0
    %v1507 = vadd.f32 0.0, %v1506
    %v1508 = vpop.f32.mrb[0].mxu0
    %v1509 = vadd.f32 0.0, %v1508
    %v1510 = vpop.f32.mrb[0].mxu0
    %v1511 = vpop.f32.mrb[0].mxu0
    %1512 = vdwg.mxu0
    %1513 = vmatprep.subr.bf16.mxu0 %v947
    %1514 = vmatpush1.bf16.msra.mxu0 %v946
    %1515 = vmatprep.subr.bf16.mxu0 %v951
    %1516 = vmatpush1.bf16.msra.mxu0 %v950
    %1517 = vmatprep.subr.bf16.mxu0 %v955
    %1518 = vmatpush1.bf16.msra.mxu0 %v954
    %1519 = vmatprep.subr.bf16.mxu0 %v959
    %1520 = vmatpush1.bf16.msra.mxu0 %v958
    %1521 = vmatprep.subr.bf16.mxu0 %v963
    %1522 = vmatpush1.bf16.msra.mxu0 %v962
    %1523 = vmatprep.subr.bf16.mxu0 %v967
    %1524 = vmatpush1.bf16.msra.mxu0 %v966
    %1525 = vmatprep.subr.bf16.mxu0 %v971
    %1526 = vmatpush1.bf16.msra.mxu0 %v970
    %1527 = vmatprep.subr.bf16.mxu0 %v975
    %1528 = vmatpush1.bf16.msra.mxu0 %v974
    %1529 = vmatprep.subr.bf16.mxu0 0
    %1530 = vmatpush1.bf16.msra.mxu0 0
    %1531 = vmatprep.subr.bf16.mxu0 0
    %1532 = vmatpush1.bf16.msra.mxu0 0
    %1533 = vmatprep.subr.bf16.mxu0 0
    %1534 = vmatpush1.bf16.msra.mxu0 0
    %1535 = vmatprep.subr.bf16.mxu0 0
    %1536 = vmatpush1.bf16.msra.mxu0 0
    %1537 = vmatprep.subr.bf16.mxu0 0
    %1538 = vmatpush1.bf16.msra.mxu0 0
    %1539 = vmatprep.subr.bf16.mxu0 0
    %1540 = vmatpush1.bf16.msra.mxu0 0
    %1541 = vmatprep.subr.bf16.mxu0 0
    %1542 = vmatpush1.bf16.msra.mxu0 0
    %1543 = vmatprep.subr.bf16.mxu0 0
    %1544 = vmatpush1.bf16.msra.mxu0 0
    %1545 = vmatprep.mubr.bf16.mxu0 0
    %1546 = vmatmul.mubr.bf16.gmra.mrb[0].mxu0 %v1471
    %v1547 = vpop.f32.mrb[0].mxu0
    %v1548 = vadd.f32 0.0, %v1547
    %v1549 = vpop.f32.mrb[0].mxu0
    %v1550 = vadd.f32 0.0, %v1549
    %v1551 = vpop.f32.mrb[0].mxu0
    %v1552 = vpop.f32.mrb[0].mxu0
    %1553 = vdwg.mxu0
    %v1554 = vadd.f32 %v1467, %v1507
    %v1555 = vadd.f32 %v1468, %v1509
    %v1556 = vadd.f32 %v1469, %v1548
    %v1557 = vadd.f32 %v1470, %v1550
    %v1558 = vxor.u32 %v1554, 2147483648
    %v1559 = vmul.f32 %v1558, 1.442695
    %v1560 = vpow.pop %v1559
    %v1561 = vadd.f32 %v1560, 1.0
    %v1562 = vrcp.pop %v1561
    %v1563 = vmul.f32 1.0, %v1562
    %v1564 = vxor.u32 %v1555, 2147483648
    %v1565 = vmul.f32 %v1564, 1.442695
    %v1566 = vpow.pop %v1565
    %v1567 = vadd.f32 %v1566, 1.0
    %v1568 = vrcp.pop %v1567
    %v1569 = vmul.f32 1.0, %v1568
    %v1570 = vtanh.pop %v1556
    %v1571 = vxor.u32 %v1557, 2147483648
    %v1572 = vmul.f32 %v1571, 1.442695
    %v1573 = vpow.pop %v1572
    %v1574 = vadd.f32 %v1573, 1.0
    %v1575 = vrcp.pop %v1574
    %v1576 = vmul.f32 1.0, %v1575
    %v1577 = vmul.f32 %v1569, %v1463
    %v1578 = vmul.f32 %v1563, %v1570
    %v1579 = vadd.f32 %v1577, %v1578
    %v1580 = vtanh.pop %v1579
    %v1581 = vmul.f32 %v1576, %v1580
    %s1582 = scalar_lea.vmem [#allocation2], 160
    %v1583 = vld [vmem:[%s1582] sm:$0xff]
    %v1584 = vld [vmem:[%s1582 + $0x8] sm:$0xff]
    %v1585 = vld [vmem:[%s1582 + $0x10] sm:$0xff]
    %v1586 = vld [vmem:[%s1582 + $0x18] sm:$0xff]
    %v1587 = vpack.c.bf16 %v1581, %v1581
    %1588 = vmatprep.subr.bf16.mxu0 %v945
    %1589 = vmatpush1.bf16.msra.mxu0 %v944
    %1590 = vmatprep.subr.bf16.mxu0 %v949
    %1591 = vmatpush1.bf16.msra.mxu0 %v948
    %1592 = vmatprep.subr.bf16.mxu0 %v953
    %1593 = vmatpush1.bf16.msra.mxu0 %v952
    %1594 = vmatprep.subr.bf16.mxu0 %v957
    %1595 = vmatpush1.bf16.msra.mxu0 %v956
    %1596 = vmatprep.subr.bf16.mxu0 %v961
    %1597 = vmatpush1.bf16.msra.mxu0 %v960
    %1598 = vmatprep.subr.bf16.mxu0 %v965
    %1599 = vmatpush1.bf16.msra.mxu0 %v964
    %1600 = vmatprep.subr.bf16.mxu0 %v969
    %1601 = vmatpush1.bf16.msra.mxu0 %v968
    %1602 = vmatprep.subr.bf16.mxu0 %v973
    %1603 = vmatpush1.bf16.msra.mxu0 %v972
    %1604 = vmatprep.subr.bf16.mxu0 0
    %1605 = vmatpush1.bf16.msra.mxu0 0
    %1606 = vmatprep.subr.bf16.mxu0 0
    %1607 = vmatpush1.bf16.msra.mxu0 0
    %1608 = vmatprep.subr.bf16.mxu0 0
    %1609 = vmatpush1.bf16.msra.mxu0 0
    %1610 = vmatprep.subr.bf16.mxu0 0
    %1611 = vmatpush1.bf16.msra.mxu0 0
    %1612 = vmatprep.subr.bf16.mxu0 0
    %1613 = vmatpush1.bf16.msra.mxu0 0
    %1614 = vmatprep.subr.bf16.mxu0 0
    %1615 = vmatpush1.bf16.msra.mxu0 0
    %1616 = vmatprep.subr.bf16.mxu0 0
    %1617 = vmatpush1.bf16.msra.mxu0 0
    %1618 = vmatprep.subr.bf16.mxu0 0
    %1619 = vmatpush1.bf16.msra.mxu0 0
    %1620 = vmatprep.mubr.bf16.mxu0 0
    %1621 = vmatmul.mubr.bf16.gmra.mrb[0].mxu0 %v1587
    %v1622 = vpop.f32.mrb[0].mxu0
    %v1623 = vadd.f32 0.0, %v1622
    %v1624 = vpop.f32.mrb[0].mxu0
    %v1625 = vadd.f32 0.0, %v1624
    %v1626 = vpop.f32.mrb[0].mxu0
    %v1627 = vpop.f32.mrb[0].mxu0
    %1628 = vdwg.mxu0
    %1629 = vmatprep.subr.bf16.mxu0 %v947
    %1630 = vmatpush1.bf16.msra.mxu0 %v946
    %1631 = vmatprep.subr.bf16.mxu0 %v951
    %1632 = vmatpush1.bf16.msra.mxu0 %v950
    %1633 = vmatprep.subr.bf16.mxu0 %v955
    %1634 = vmatpush1.bf16.msra.mxu0 %v954
    %1635 = vmatprep.subr.bf16.mxu0 %v959
    %1636 = vmatpush1.bf16.msra.mxu0 %v958
    %1637 = vmatprep.subr.bf16.mxu0 %v963
    %1638 = vmatpush1.bf16.msra.mxu0 %v962
    %1639 = vmatprep.subr.bf16.mxu0 %v967
    %1640 = vmatpush1.bf16.msra.mxu0 %v966
    %1641 = vmatprep.subr.bf16.mxu0 %v971
    %1642 = vmatpush1.bf16.msra.mxu0 %v970
    %1643 = vmatprep.subr.bf16.mxu0 %v975
    %1644 = vmatpush1.bf16.msra.mxu0 %v974
    %1645 = vmatprep.subr.bf16.mxu0 0
    %1646 = vmatpush1.bf16.msra.mxu0 0
    %1647 = vmatprep.subr.bf16.mxu0 0
    %1648 = vmatpush1.bf16.msra.mxu0 0
    %1649 = vmatprep.subr.bf16.mxu0 0
    %1650 = vmatpush1.bf16.msra.mxu0 0
    %1651 = vmatprep.subr.bf16.mxu0 0
    %1652 = vmatpush1.bf16.msra.mxu0 0
    %1653 = vmatprep.subr.bf16.mxu0 0
    %1654 = vmatpush1.bf16.msra.mxu0 0
    %1655 = vmatprep.subr.bf16.mxu0 0
    %1656 = vmatpush1.bf16.msra.mxu0 0
    %1657 = vmatprep.subr.bf16.mxu0 0
    %1658 = vmatpush1.bf16.msra.mxu0 0
    %1659 = vmatprep.subr.bf16.mxu0 0
    %1660 = vmatpush1.bf16.msra.mxu0 0
    %1661 = vmatprep.mubr.bf16.mxu0 0
    %1662 = vmatmul.mubr.bf16.gmra.mrb[0].mxu0 %v1587
    %v1663 = vpop.f32.mrb[0].mxu0
    %v1664 = vadd.f32 0.0, %v1663
    %v1665 = vpop.f32.mrb[0].mxu0
    %v1666 = vadd.f32 0.0, %v1665
    %v1667 = vpop.f32.mrb[0].mxu0
    %v1668 = vpop.f32.mrb[0].mxu0
    %1669 = vdwg.mxu0
    %v1670 = vadd.f32 %v1583, %v1623
    %v1671 = vadd.f32 %v1584, %v1625
    %v1672 = vadd.f32 %v1585, %v1664
    %v1673 = vadd.f32 %v1586, %v1666
    %v1674 = vxor.u32 %v1670, 2147483648
    %v1675 = vmul.f32 %v1674, 1.442695
    %v1676 = vpow.pop %v1675
    %v1677 = vadd.f32 %v1676, 1.0
    %v1678 = vrcp.pop %v1677
    %v1679 = vmul.f32 1.0, %v1678
    %v1680 = vxor.u32 %v1671, 2147483648
    %v1681 = vmul.f32 %v1680, 1.442695
    %v1682 = vpow.pop %v1681
    %v1683 = vadd.f32 %v1682, 1.0
    %v1684 = vrcp.pop %v1683
    %v1685 = vmul.f32 1.0, %v1684
    %v1686 = vtanh.pop %v1672
    %v1687 = vxor.u32 %v1673, 2147483648
    %v1688 = vmul.f32 %v1687, 1.442695
    %v1689 = vpow.pop %v1688
    %v1690 = vadd.f32 %v1689, 1.0
    %v1691 = vrcp.pop %v1690
    %v1692 = vmul.f32 1.0, %v1691
    %v1693 = vmul.f32 %v1685, %v1579
    %v1694 = vmul.f32 %v1679, %v1686
    %v1695 = vadd.f32 %v1693, %v1694
    %v1696 = vtanh.pop %v1695
    %v1697 = vmul.f32 %v1692, %v1696
    %s1698 = scalar_lea.vmem [#allocation2], 192
    %v1699 = vld [vmem:[%s1698] sm:$0xff]
    %v1700 = vld [vmem:[%s1698 + $0x8] sm:$0xff]
    %v1701 = vld [vmem:[%s1698 + $0x10] sm:$0xff]
    %v1702 = vld [vmem:[%s1698 + $0x18] sm:$0xff]
    %v1703 = vpack.c.bf16 %v1697, %v1697
    %1704 = vmatprep.subr.bf16.mxu0 %v945
    %1705 = vmatpush1.bf16.msra.mxu0 %v944
    %1706 = vmatprep.subr.bf16.mxu0 %v949
    %1707 = vmatpush1.bf16.msra.mxu0 %v948
    %1708 = vmatprep.subr.bf16.mxu0 %v953
    %1709 = vmatpush1.bf16.msra.mxu0 %v952
    %1710 = vmatprep.subr.bf16.mxu0 %v957
    %1711 = vmatpush1.bf16.msra.mxu0 %v956
    %1712 = vmatprep.subr.bf16.mxu0 %v961
    %1713 = vmatpush1.bf16.msra.mxu0 %v960
    %1714 = vmatprep.subr.bf16.mxu0 %v965
    %1715 = vmatpush1.bf16.msra.mxu0 %v964
    %1716 = vmatprep.subr.bf16.mxu0 %v969
    %1717 = vmatpush1.bf16.msra.mxu0 %v968
    %1718 = vmatprep.subr.bf16.mxu0 %v973
    %1719 = vmatpush1.bf16.msra.mxu0 %v972
    %1720 = vmatprep.subr.bf16.mxu0 0
    %1721 = vmatpush1.bf16.msra.mxu0 0
    %1722 = vmatprep.subr.bf16.mxu0 0
    %1723 = vmatpush1.bf16.msra.mxu0 0
    %1724 = vmatprep.subr.bf16.mxu0 0
    %1725 = vmatpush1.bf16.msra.mxu0 0
    %1726 = vmatprep.subr.bf16.mxu0 0
    %1727 = vmatpush1.bf16.msra.mxu0 0
    %1728 = vmatprep.subr.bf16.mxu0 0
    %1729 = vmatpush1.bf16.msra.mxu0 0
    %1730 = vmatprep.subr.bf16.mxu0 0
    %1731 = vmatpush1.bf16.msra.mxu0 0
    %1732 = vmatprep.subr.bf16.mxu0 0
    %1733 = vmatpush1.bf16.msra.mxu0 0
    %1734 = vmatprep.subr.bf16.mxu0 0
    %1735 = vmatpush1.bf16.msra.mxu0 0
    %1736 = vmatprep.mubr.bf16.mxu0 0
    %1737 = vmatmul.mubr.bf16.gmra.mrb[0].mxu0 %v1703
    %v1738 = vpop.f32.mrb[0].mxu0
    %v1739 = vadd.f32 0.0, %v1738
    %v1740 = vpop.f32.mrb[0].mxu0
    %v1741 = vadd.f32 0.0, %v1740
    %v1742 = vpop.f32.mrb[0].mxu0
    %v1743 = vpop.f32.mrb[0].mxu0
    %1744 = vdwg.mxu0
    %1745 = vmatprep.subr.bf16.mxu0 %v947
    %1746 = vmatpush1.bf16.msra.mxu0 %v946
    %1747 = vmatprep.subr.bf16.mxu0 %v951
    %1748 = vmatpush1.bf16.msra.mxu0 %v950
    %1749 = vmatprep.subr.bf16.mxu0 %v955
    %1750 = vmatpush1.bf16.msra.mxu0 %v954
    %1751 = vmatprep.subr.bf16.mxu0 %v959
    %1752 = vmatpush1.bf16.msra.mxu0 %v958
    %1753 = vmatprep.subr.bf16.mxu0 %v963
    %1754 = vmatpush1.bf16.msra.mxu0 %v962
    %1755 = vmatprep.subr.bf16.mxu0 %v967
    %1756 = vmatpush1.bf16.msra.mxu0 %v966
    %1757 = vmatprep.subr.bf16.mxu0 %v971
    %1758 = vmatpush1.bf16.msra.mxu0 %v970
    %1759 = vmatprep.subr.bf16.mxu0 %v975
    %1760 = vmatpush1.bf16.msra.mxu0 %v974
    %1761 = vmatprep.subr.bf16.mxu0 0
    %1762 = vmatpush1.bf16.msra.mxu0 0
    %1763 = vmatprep.subr.bf16.mxu0 0
    %1764 = vmatpush1.bf16.msra.mxu0 0
    %1765 = vmatprep.subr.bf16.mxu0 0
    %1766 = vmatpush1.bf16.msra.mxu0 0
    %1767 = vmatprep.subr.bf16.mxu0 0
    %1768 = vmatpush1.bf16.msra.mxu0 0
    %1769 = vmatprep.subr.bf16.mxu0 0
    %1770 = vmatpush1.bf16.msra.mxu0 0
    %1771 = vmatprep.subr.bf16.mxu0 0
    %1772 = vmatpush1.bf16.msra.mxu0 0
    %1773 = vmatprep.subr.bf16.mxu0 0
    %1774 = vmatpush1.bf16.msra.mxu0 0
    %1775 = vmatprep.subr.bf16.mxu0 0
    %1776 = vmatpush1.bf16.msra.mxu0 0
    %1777 = vmatprep.mubr.bf16.mxu0 0
    %1778 = vmatmul.mubr.bf16.gmra.mrb[0].mxu0 %v1703
    %v1779 = vpop.f32.mrb[0].mxu0
    %v1780 = vadd.f32 0.0, %v1779
    %v1781 = vpop.f32.mrb[0].mxu0
    %v1782 = vadd.f32 0.0, %v1781
    %v1783 = vpop.f32.mrb[0].mxu0
    %v1784 = vpop.f32.mrb[0].mxu0
    %1785 = vdwg.mxu0
    %v1786 = vadd.f32 %v1699, %v1739
    %v1787 = vadd.f32 %v1700, %v1741
    %v1788 = vadd.f32 %v1701, %v1780
    %v1789 = vadd.f32 %v1702, %v1782
    %v1790 = vxor.u32 %v1786, 2147483648
    %v1791 = vmul.f32 %v1790, 1.442695
    %v1792 = vpow.pop %v1791
    %v1793 = vadd.f32 %v1792, 1.0
    %v1794 = vrcp.pop %v1793
    %v1795 = vmul.f32 1.0, %v1794
    %v1796 = vxor.u32 %v1787, 2147483648
    %v1797 = vmul.f32 %v1796, 1.442695
    %v1798 = vpow.pop %v1797
    %v1799 = vadd.f32 %v1798, 1.0
    %v1800 = vrcp.pop %v1799
    %v1801 = vmul.f32 1.0, %v1800
    %v1802 = vtanh.pop %v1788
    %v1803 = vxor.u32 %v1789, 2147483648
    %v1804 = vmul.f32 %v1803, 1.442695
    %v1805 = vpow.pop %v1804
    %v1806 = vadd.f32 %v1805, 1.0
    %v1807 = vrcp.pop %v1806
    %v1808 = vmul.f32 1.0, %v1807
    %v1809 = vmul.f32 %v1801, %v1695
    %v1810 = vmul.f32 %v1795, %v1802
    %v1811 = vadd.f32 %v1809, %v1810
    %v1812 = vtanh.pop %v1811
    %v1813 = vmul.f32 %v1808, %v1812
    %s1814 = scalar_lea.vmem [#allocation2], 224
    %v1815 = vld [vmem:[%s1814] sm:$0xff]
    %v1816 = vld [vmem:[%s1814 + $0x8] sm:$0xff]
    %v1817 = vld [vmem:[%s1814 + $0x10] sm:$0xff]
    %v1818 = vld [vmem:[%s1814 + $0x18] sm:$0xff]
    %v1819 = vpack.c.bf16 %v1813, %v1813
    %1820 = vmatprep.subr.bf16.mxu0 %v945
    %1821 = vmatpush1.bf16.msra.mxu0 %v944
    %1822 = vmatprep.subr.bf16.mxu0 %v949
    %1823 = vmatpush1.bf16.msra.mxu0 %v948
    %1824 = vmatprep.subr.bf16.mxu0 %v953
    %1825 = vmatpush1.bf16.msra.mxu0 %v952
    %1826 = vmatprep.subr.bf16.mxu0 %v957
    %1827 = vmatpush1.bf16.msra.mxu0 %v956
    %1828 = vmatprep.subr.bf16.mxu0 %v961
    %1829 = vmatpush1.bf16.msra.mxu0 %v960
    %1830 = vmatprep.subr.bf16.mxu0 %v965
    %1831 = vmatpush1.bf16.msra.mxu0 %v964
    %1832 = vmatprep.subr.bf16.mxu0 %v969
    %1833 = vmatpush1.bf16.msra.mxu0 %v968
    %1834 = vmatprep.subr.bf16.mxu0 %v973
    %1835 = vmatpush1.bf16.msra.mxu0 %v972
    %1836 = vmatprep.subr.bf16.mxu0 0
    %1837 = vmatpush1.bf16.msra.mxu0 0
    %1838 = vmatprep.subr.bf16.mxu0 0
    %1839 = vmatpush1.bf16.msra.mxu0 0
    %1840 = vmatprep.subr.bf16.mxu0 0
    %1841 = vmatpush1.bf16.msra.mxu0 0
    %1842 = vmatprep.subr.bf16.mxu0 0
    %1843 = vmatpush1.bf16.msra.mxu0 0
    %1844 = vmatprep.subr.bf16.mxu0 0
    %1845 = vmatpush1.bf16.msra.mxu0 0
    %1846 = vmatprep.subr.bf16.mxu0 0
    %1847 = vmatpush1.bf16.msra.mxu0 0
    %1848 = vmatprep.subr.bf16.mxu0 0
    %1849 = vmatpush1.bf16.msra.mxu0 0
    %1850 = vmatprep.subr.bf16.mxu0 0
    %1851 = vmatpush1.bf16.msra.mxu0 0
    %1852 = vmatprep.mubr.bf16.mxu0 0
    %1853 = vmatmul.mubr.bf16.gmra.mrb[0].mxu0 %v1819
    %v1854 = vpop.f32.mrb[0].mxu0
    %v1855 = vadd.f32 0.0, %v1854
    %v1856 = vpop.f32.mrb[0].mxu0
    %v1857 = vadd.f32 0.0, %v1856
    %v1858 = vpop.f32.mrb[0].mxu0
    %v1859 = vpop.f32.mrb[0].mxu0
    %1860 = vdwg.mxu0
    %1861 = vmatprep.subr.bf16.mxu0 %v947
    %1862 = vmatpush1.bf16.msra.mxu0 %v946
    %1863 = vmatprep.subr.bf16.mxu0 %v951
    %1864 = vmatpush1.bf16.msra.mxu0 %v950
    %1865 = vmatprep.subr.bf16.mxu0 %v955
    %1866 = vmatpush1.bf16.msra.mxu0 %v954
    %1867 = vmatprep.subr.bf16.mxu0 %v959
    %1868 = vmatpush1.bf16.msra.mxu0 %v958
    %1869 = vmatprep.subr.bf16.mxu0 %v963
    %1870 = vmatpush1.bf16.msra.mxu0 %v962
    %1871 = vmatprep.subr.bf16.mxu0 %v967
    %1872 = vmatpush1.bf16.msra.mxu0 %v966
    %1873 = vmatprep.subr.bf16.mxu0 %v971
    %1874 = vmatpush1.bf16.msra.mxu0 %v970
    %1875 = vmatprep.subr.bf16.mxu0 %v975
    %1876 = vmatpush1.bf16.msra.mxu0 %v974
    %1877 = vmatprep.subr.bf16.mxu0 0
    %1878 = vmatpush1.bf16.msra.mxu0 0
    %1879 = vmatprep.subr.bf16.mxu0 0
    %1880 = vmatpush1.bf16.msra.mxu0 0
    %1881 = vmatprep.subr.bf16.mxu0 0
    %1882 = vmatpush1.bf16.msra.mxu0 0
    %1883 = vmatprep.subr.bf16.mxu0 0
    %1884 = vmatpush1.bf16.msra.mxu0 0
    %1885 = vmatprep.subr.bf16.mxu0 0
    %1886 = vmatpush1.bf16.msra.mxu0 0
    %1887 = vmatprep.subr.bf16.mxu0 0
    %1888 = vmatpush1.bf16.msra.mxu0 0
    %1889 = vmatprep.subr.bf16.mxu0 0
    %1890 = vmatpush1.bf16.msra.mxu0 0
    %1891 = vmatprep.subr.bf16.mxu0 0
    %1892 = vmatpush1.bf16.msra.mxu0 0
    %1893 = vmatprep.mubr.bf16.mxu0 0
    %1894 = vmatmul.mubr.bf16.gmra.mrb[0].mxu0 %v1819
    %v1895 = vpop.f32.mrb[0].mxu0
    %v1896 = vadd.f32 0.0, %v1895
    %v1897 = vpop.f32.mrb[0].mxu0
    %v1898 = vadd.f32 0.0, %v1897
    %v1899 = vpop.f32.mrb[0].mxu0
    %v1900 = vpop.f32.mrb[0].mxu0
    %1901 = vdwg.mxu0
    %v1902 = vadd.f32 %v1815, %v1855
    %v1903 = vadd.f32 %v1816, %v1857
    %v1904 = vadd.f32 %v1817, %v1896
    %v1905 = vadd.f32 %v1818, %v1898
    %v1906 = vxor.u32 %v1902, 2147483648
    %v1907 = vmul.f32 %v1906, 1.442695
    %v1908 = vpow.pop %v1907
    %v1909 = vadd.f32 %v1908, 1.0
    %v1910 = vrcp.pop %v1909
    %v1911 = vmul.f32 1.0, %v1910
    %v1912 = vxor.u32 %v1903, 2147483648
    %v1913 = vmul.f32 %v1912, 1.442695
    %v1914 = vpow.pop %v1913
    %v1915 = vadd.f32 %v1914, 1.0
    %v1916 = vrcp.pop %v1915
    %v1917 = vmul.f32 1.0, %v1916
    %v1918 = vtanh.pop %v1904
    %v1919 = vxor.u32 %v1905, 2147483648
    %v1920 = vmul.f32 %v1919, 1.442695
    %v1921 = vpow.pop %v1920
    %v1922 = vadd.f32 %v1921, 1.0
    %v1923 = vrcp.pop %v1922
    %v1924 = vmul.f32 1.0, %v1923
    %v1925 = vmul.f32 %v1917, %v1811
    %v1926 = vmul.f32 %v1911, %v1918
    %v1927 = vadd.f32 %v1925, %v1926
    %v1928 = vtanh.pop %v1927
    %v1929 = vmul.f32 %v1924, %v1928
    %v1930 = vpack.c.bf16 %v1929, %v1929
    %v1931 = vld [vmem:[#allocation8] sm:$0xf]
    %v1932 = vld [vmem:[#allocation8 + $0x4] sm:$0xf]
    %v1933 = vld [vmem:[#allocation8 + $0x8] sm:$0xf]
    %v1934 = vld [vmem:[#allocation8 + $0xc] sm:$0xf]
    %v1935 = vld [vmem:[#allocation8 + $0x10] sm:$0xf]
    %v1936 = vld [vmem:[#allocation8 + $0x14] sm:$0xf]
    %v1937 = vld [vmem:[#allocation8 + $0x18] sm:$0xf]
    %v1938 = vld [vmem:[#allocation8 + $0x1c] sm:$0xf]
    %v1939 = vld [vmem:[#allocation8 + $0x20] sm:$0xf]
    %v1940 = vld [vmem:[#allocation8 + $0x24] sm:$0xf]
    %v1941 = vld [vmem:[#allocation8 + $0x28] sm:$0xf]
    %v1942 = vld [vmem:[#allocation8 + $0x2c] sm:$0xf]
    %v1943 = vld [vmem:[#allocation8 + $0x30] sm:$0xf]
    %v1944 = vld [vmem:[#allocation8 + $0x34] sm:$0xf]
    %v1945 = vld [vmem:[#allocation8 + $0x38] sm:$0xf]
    %v1946 = vld [vmem:[#allocation8 + $0x3c] sm:$0xf]
    %v1947 = vld [vmem:[#allocation10] sm:$0x1]
    %v1949 = vlaneseq
    %v1950 = vshrl.u32 %v1949, 7
    %v1951 = vsub.s32 0, %v1950
    %v1952 = vrot.slane %v1947, %v1951
    %v1970 = vunpack.c.l.b16 %v1931
    %v1971 = vunpack.c.l.b16 %v1932
    %v1972 = vunpack.c.l.b16 %v1933
    %v1973 = vunpack.c.l.b16 %v1934
    %v1974 = vunpack.c.l.b16 %v1935
    %v1975 = vunpack.c.l.b16 %v1936
    %v1976 = vunpack.c.l.b16 %v1937
    %v1977 = vunpack.c.l.b16 %v1938
    %v1978 = vunpack.c.l.b16 %v1939
    %v1979 = vunpack.c.l.b16 %v1940
    %v1980 = vunpack.c.l.b16 %v1941
    %v1981 = vunpack.c.l.b16 %v1942
    %v1982 = vunpack.c.l.b16 %v1943
    %v1983 = vunpack.c.l.b16 %v1944
    %v1984 = vunpack.c.l.b16 %v1945
    %v1985 = vunpack.c.l.b16 %v1946
    %v1986 = vpack.c.b16 %v1971, %v1970
    %v1987 = vpack.c.b16 %v1973, %v1972
    %v1988 = vpack.c.b16 %v1975, %v1974
    %v1989 = vpack.c.b16 %v1977, %v1976
    %v1990 = vpack.c.b16 %v1979, %v1978
    %v1991 = vpack.c.b16 %v1981, %v1980
    %v1992 = vpack.c.b16 %v1983, %v1982
    %v1993 = vpack.c.b16 %v1985, %v1984
    %2002 = vmatprep.subr.bf16.mxu0 0
    %2003 = vmatpush1.bf16.msra.mxu0 %v1986
    %2004 = vmatprep.subr.bf16.mxu0 0
    %2005 = vmatpush1.bf16.msra.mxu0 %v1987
    %2006 = vmatprep.subr.bf16.mxu0 0
    %2007 = vmatpush1.bf16.msra.mxu0 %v1988
    %2008 = vmatprep.subr.bf16.mxu0 0
    %2009 = vmatpush1.bf16.msra.mxu0 %v1989
    %2010 = vmatprep.subr.bf16.mxu0 0
    %2011 = vmatpush1.bf16.msra.mxu0 %v1990
    %2012 = vmatprep.subr.bf16.mxu0 0
    %2013 = vmatpush1.bf16.msra.mxu0 %v1991
    %2014 = vmatprep.subr.bf16.mxu0 0
    %2015 = vmatpush1.bf16.msra.mxu0 %v1992
    %2016 = vmatprep.subr.bf16.mxu0 0
    %2017 = vmatpush1.bf16.msra.mxu0 %v1993
    %2018 = vmatprep.subr.bf16.mxu0 0
    %2019 = vmatpush1.bf16.msra.mxu0 0
    %2020 = vmatprep.subr.bf16.mxu0 0
    %2021 = vmatpush1.bf16.msra.mxu0 0
    %2022 = vmatprep.subr.bf16.mxu0 0
    %2023 = vmatpush1.bf16.msra.mxu0 0
    %2024 = vmatprep.subr.bf16.mxu0 0
    %2025 = vmatpush1.bf16.msra.mxu0 0
    %2026 = vmatprep.subr.bf16.mxu0 0
    %2027 = vmatpush1.bf16.msra.mxu0 0
    %2028 = vmatprep.subr.bf16.mxu0 0
    %2029 = vmatpush1.bf16.msra.mxu0 0
    %2030 = vmatprep.subr.bf16.mxu0 0
    %2031 = vmatpush1.bf16.msra.mxu0 0
    %2032 = vmatprep.subr.bf16.mxu0 0
    %2033 = vmatpush1.bf16.msra.mxu0 0
    %2034 = vmatprep.mubr.bf16.mxu0 0
    %2035 = vmatmul.mubr.bf16.gmra.mrb[0].mxu0 %v1930
    %v2036 = vpop.f32.mrb[0].mxu0
    %v2037 = vadd.f32 %v1952, %v2036
    %v2038 = vpop.f32.mrb[0].mxu0
    %v2039 = vpop.f32.mrb[0].mxu0
    %v2040 = vpop.f32.mrb[0].mxu0
    %2041 = vdwg.mxu0
    %v2042 = vlaneseq
    %v2043 = vand.u32 %v2042, 127
    %vm2044 = vcmp.ge.s32.totalorder %v2043, 51
    %vm2045 = vcmp.lt.s32.totalorder %v2043, 68
    %vm2046 = vmand %vm2044, %vm2045
    %v2047 = vxor.u32 %v2037, 2147483648
    %v2048 = vmul.f32 %v2047, 1.442695
    %v2049 = vpow.pop %v2048
    %v2050 = vadd.f32 %v2049, 1.0
    %v2051 = vrcp.pop %v2050
    %v2052 = vmul.f32 1.0, %v2051
    %v2053 = vsel %vm2046, %v2052, %v2037
    %2054 = vst [vmem:[%s12] sm:$0xff] %v2053
    %2055 = vst [vmem:[%s13] sm:$0xff] %v1929
    %2056 = vst [vmem:[%s14] sm:$0xff] %v1927
    // Predicated region
    $region70: #{pose_estimator_forward.1} parent=1 // pred_check
      _
    $region71: #{pose_estimator_forward.1} parent=1 // pred_check_branch
      %2058 = sbr.rel (0) target = $region73
    $region72: #{pose_estimator_forward.1} parent=1 // pred_region
      _
    $region73: #{pose_estimator_forward.1} parent=1 // pred_fallthru
      _
    // Predicated region
    $region74: #{pose_estimator_forward.1} parent=1 // pred_check
      _
    $region75: #{pose_estimator_forward.1} parent=1 // pred_check_branch
      %2060 = sbr.rel (0) target = $region77
    $region76: #{pose_estimator_forward.1} parent=1 // pred_region
      _
    $region77: #{pose_estimator_forward.1} parent=1 // pred_fallthru
      _
    // Predicated region
    $region78: #{pose_estimator_forward.1} parent=1 // pred_check
      _
    $region79: #{pose_estimator_forward.1} parent=1 // pred_check_branch
      %2062 = sbr.rel (0) target = $region81
    $region80: #{pose_estimator_forward.1} parent=1 // pred_region
      _
    $region81: #{pose_estimator_forward.1} parent=1 // pred_fallthru
      _
    // Predicated region
    $region82: #{pose_estimator_forward.1} parent=1 // pred_check
      _
    $region83: #{pose_estimator_forward.1} parent=1 // pred_check_branch
      %2064 = sbr.rel (0) target = $region85
    $region84: #{pose_estimator_forward.1} parent=1 // pred_region
      _
    $region85: #{pose_estimator_forward.1} parent=1 // pred_fallthru
      _
    // Predicated region
    $region86: #{pose_estimator_forward.1} parent=1 // pred_check
      _
    $region87: #{pose_estimator_forward.1} parent=1 // pred_check_branch
      %2066 = sbr.rel (0) target = $region89
    $region88: #{pose_estimator_forward.1} parent=1 // pred_region
      _
    $region89: #{pose_estimator_forward.1} parent=1 // pred_fallthru
      _
    // Predicated region
    $region90: #{pose_estimator_forward.1} parent=1 // pred_check
      _
    $region91: #{pose_estimator_forward.1} parent=1 // pred_check_branch
      %2068 = sbr.rel (0) target = $region93
    $region92: #{pose_estimator_forward.1} parent=1 // pred_region
      _
    $region93: #{pose_estimator_forward.1} parent=1 // pred_fallthru
      _
    %2069 = vsyncpa [#allocation4], 1
    %2070 = vsyncpa [#allocation6], 1
    %2071 = vsyncpa [#allocation9], 1

</llo_original>
